<compile_context>
chip_gen: v6e
topology: v6e:2x2x1
jax: 0.10.0
libtpu: 0.0.40
codegen_flags: <defaults>
</compile_context>

<pallas_src>
import jax
import jax.numpy as jnp
from jax.experimental import pallas as pl
from jax.experimental.pallas import tpu as pltpu

BN_EPS = 1e-5
NEG_BIG = -1e30   # per-row bias that forces ReLU(pad row) == 0


def mlp_kernel(x_ref, a1_ref, rb1_ref, w2_ref, rb2_ref, pool_ref, wf_ref, bf_ref,
               o_ref):
    x = x_ref[0]                                        # (M, 2), M = Bt * Lp
    M = x.shape[0]

    # ---- Block 1: fused Linear(2,32) + Conv1d(32,64,k=3,p=1) + BN + ReLU ----
    # K=2 contraction done on the VPU as broadcast FMAs (MXU would be ~1% utilized).
    c_prev = x[:, 0:1] * a1_ref[0:1, :] + x[:, 1:2] * a1_ref[1:2, :]   # x @ A0
    c_mid  = x[:, 0:1] * a1_ref[2:3, :] + x[:, 1:2] * a1_ref[3:4, :]   # x @ A1
    c_next = x[:, 0:1] * a1_ref[4:5, :] + x[:, 1:2] * a1_ref[5:6, :]   # x @ A2
    y1 = (pltpu.roll(c_prev, shift=1, axis=0)            # y[l] += (x @ A0)[l-1]
          + c_mid
          + pltpu.roll(c_next, shift=M - 1, axis=0)      # y[l] += (x @ A2)[l+1]
          + rb1_ref[...])
    h1 = jnp.maximum(y1, 0.0)                            # (M, 64); pad rows -> 0

    # ---- Block 2: fused Linear(64,128) + Conv1d(128,256,k=3,p=1) + BN + ReLU ----
    h1p = pltpu.roll(h1, shift=1, axis=0)
    h1n = pltpu.roll(h1, shift=M - 1, axis=0)
    y2 = (jnp.dot(h1p, w2_ref[0], preferred_element_type=jnp.float32)
          + jnp.dot(h1,  w2_ref[1], preferred_element_type=jnp.float32)
          + jnp.dot(h1n, w2_ref[2], preferred_element_type=jnp.float32)
          + rb2_ref[...])
    h2 = jnp.maximum(y2, 0.0)                            # (M, 256); pad rows == 0

    # ---- mean over the valid sequence rows (as a matmul) + final Linear ----
    pooled = jnp.dot(pool_ref[...], h2, preferred_element_type=jnp.float32)  # (Bt,256)
    o_ref[0] = (jnp.dot(pooled, wf_ref[...], preferred_element_type=jnp.float32)
                + bf_ref[...])


def make_params(key, classes):
    ks = jax.random.split(key, 5)

    def linear_init(k, fan_in, fan_out):
        bound = 1.0 / (fan_in ** 0.5)
        kw, kb = jax.random.split(k)
        w = jax.random.uniform(kw, (fan_in, fan_out), jnp.float32, -bound, bound)
        b = jax.random.uniform(kb, (fan_out,), jnp.float32, -bound, bound)
        return w, b

    def conv_init(k, cin, cout, ksize=3):
        # kaiming_normal_(mode='fan_out', nonlinearity='relu'): std = sqrt(2/(cout*k))
        std = (2.0 / (cout * ksize)) ** 0.5
        w = jax.random.normal(k, (ksize, cin, cout), jnp.float32) * std
        b = jnp.zeros((cout,), jnp.float32)              # nn.init.constant_(bias, 0)
        return w, b

    def bn_init(c):
        return (jnp.ones((c,), jnp.float32), jnp.zeros((c,), jnp.float32),
                jnp.zeros((c,), jnp.float32), jnp.ones((c,), jnp.float32))

    w1, b1 = linear_init(ks[0], 2, 32)
    cw1, cb1 = conv_init(ks[1], 32, 64)
    g1, be1, m1, v1 = bn_init(64)
    w2, b2 = linear_init(ks[2], 64, 128)
    cw2, cb2 = conv_init(ks[3], 128, 256)
    g2, be2, m2, v2 = bn_init(256)
    wf, bf = linear_init(ks[4], 256, classes)

    return (w1, b1, cw1, cb1, g1, be1, m1, v1,
            w2, b2, cw2, cb2, g2, be2, m2, v2, wf, bf)


def _fold_block(w, b, cw, cb, g, be, m, v, L, Lp, Bt):
    # Fold eval-mode BN into the conv, then fold the preceding Linear into the taps.
    scale = g * jax.lax.rsqrt(v + BN_EPS)                # (Cout,)
    cw = cw * scale[None, None, :]                       # (3, Cin, Cout)
    cb = (cb - m) * scale + be                           # (Cout,)
    taps = jnp.einsum('ic,kcd->kid', w, cw)              # (3, Cin_lin, Cout)
    b_all   = b @ (cw[0] + cw[1] + cw[2]) + cb           # interior rows
    b_first = b @ (cw[1] + cw[2]) + cb                   # row 0   (no left tap)
    b_last  = b @ (cw[0] + cw[1]) + cb                   # row L-1 (no right tap)
    rb = jnp.tile(b_all[None, :], (Lp, 1))
    rb = rb.at[0].set(b_first).at[L - 1].set(b_last)
    rb = rb.at[L:].set(NEG_BIG)                          # ReLU kills pad rows
    return taps, jnp.tile(rb, (Bt, 1))                   # taps, (Bt*Lp, Cout)


@jax.jit
def mlp_forward(x, params):
    (w1, b1, cw1, cb1, g1, be1, m1, v1,
     w2, b2, cw2, cb2, g2, be2, m2, v2, wf, bf) = params
    B, L, cin = x.shape
    classes = wf.shape[-1]

    Lp = (L // 8 + 1) * 8                        # multiple of 8, always >=1 pad row
    nb = 2 if (B >= 2 and B % 2 == 0) else 1     # >=2 grid blocks for v7x dual TC
    Bt = B // nb                                 # samples folded into the matmul M dim
    M = Bt * Lp

    taps1, rb1 = _fold_block(w1, b1, cw1, cb1, g1, be1, m1, v1, L, Lp, Bt)
    a1 = taps1.reshape(6, 64)                    # rows: [A0c0,A0c1,A1c0,A1c1,A2c0,A2c1]
    w2t, rb2 = _fold_block(w2, b2, cw2, cb2, g2, be2, m2, v2, L, Lp, Bt)

    # mean over valid rows as a (Bt, M) matmul with 1/L weights
    row = jnp.where(jnp.arange(Lp) < L, 1.0 / L, 0.0).astype(jnp.float32)
    pool = jnp.kron(jnp.eye(Bt, dtype=jnp.float32), row[None, :])        # (Bt, M)

    # lane-dense final linear: pad classes up to a multiple of 128
    cpad = ((classes + 127) // 128) * 128
    wf_p = jnp.zeros((wf.shape[0], cpad), jnp.float32).at[:, :classes].set(wf)
    bf_p = jnp.zeros((1, cpad), jnp.float32).at[0, :classes].set(bf)

    # pad the sequence to Lp (zero rows) and fold Bt samples per grid block
    xp = jnp.zeros((B, Lp, cin), jnp.float32).at[:, :L, :].set(x)
    xp = xp.reshape(nb, M, cin)

    def full(a):
        return pl.BlockSpec(a.shape, lambda b: (0,) * a.ndim)

    out = pl.pallas_call(
        mlp_kernel,
        out_shape=jax.ShapeDtypeStruct((nb, Bt, cpad), jnp.float32),
        grid=(nb,),
        in_specs=[pl.BlockSpec((1, M, cin), lambda b: (b, 0, 0)),
                  full(a1), full(rb1), full(w2t), full(rb2),
                  full(pool), full(wf_p), full(bf_p)],
        out_specs=pl.BlockSpec((1, Bt, cpad), lambda b: (b, 0, 0)),
        compiler_params=pltpu.CompilerParams(
            dimension_semantics=("parallel",)),
    )(xp, a1, rb1, w2t, rb2, pool, wf_p, bf_p)

    return out.reshape(B, cpad)[:, :classes]


def mlp_reference(x, params):
    (w1, b1, cw1, cb1, g1, be1, m1, v1,
     w2, b2, cw2, cb2, g2, be2, m2, v2, wf, bf) = params

    def block(h, w, b, cw, cb, g, be, m, v):
        h = jnp.einsum('blc,cd->bld', h, w) + b
        Bsz, Ls, c = h.shape
        zero = jnp.zeros((Bsz, 1, c), h.dtype)
        hp = jnp.concatenate([zero, h[:, :-1]], axis=1)
        hn = jnp.concatenate([h[:, 1:], zero], axis=1)
        y = (jnp.einsum('blc,cd->bld', hp, cw[0])
             + jnp.einsum('blc,cd->bld', h, cw[1])
             + jnp.einsum('blc,cd->bld', hn, cw[2])) + cb
        y = (y - m) * (g * jax.lax.rsqrt(v + BN_EPS)) + be
        return jnp.maximum(y, 0.0)

    h = block(x, w1, b1, cw1, cb1, g1, be1, m1, v1)
    h = block(h, w2, b2, cw2, cb2, g2, be2, m2, v2)
    return jnp.mean(h, axis=1) @ wf + bf


if __name__ == "__main__":
    B, L, CLASSES = 4, 38, 10        # sample_length=38, input feature dim = 2
    key = jax.random.PRNGKey(0)
    kx, kp = jax.random.split(key)
    x = jax.random.normal(kx, (B, L, 2), jnp.float32)
    params = make_params(kp, CLASSES)

    out = jax.block_until_ready(mlp_forward(x, params))
    ref = mlp_reference(x, params)

    assert out.shape == (B, CLASSES)
    assert jnp.allclose(out, ref, rtol=1e-3, atol=1e-3), (out, ref)
    print("KERNEL_OK")
</pallas_src>

<mosaic_0001>
module attributes {stable_mosaic.version = 11 : i64} {
  func.func @mlp_kernel(%arg0: i32, %arg1: memref<1x80x2xf32, #tpu.memory_space<vmem>>, %arg2: memref<6x64xf32, #tpu.memory_space<vmem>>, %arg3: memref<80x64xf32, #tpu.memory_space<vmem>>, %arg4: memref<3x64x256xf32, #tpu.memory_space<vmem>>, %arg5: memref<80x256xf32, #tpu.memory_space<vmem>>, %arg6: memref<2x80xf32, #tpu.memory_space<vmem>>, %arg7: memref<256x128xf32, #tpu.memory_space<vmem>>, %arg8: memref<1x128xf32, #tpu.memory_space<vmem>>, %arg9: memref<1x2x128xf32, #tpu.memory_space<vmem>>) attributes {dimension_semantics = [#tpu.dimension_semantics<parallel>], iteration_bounds = array<i64: 2>, scalar_prefetch = 0 : i64, scratch_operands = 0 : i64, tpu.core_type = #tpu.core_type<tc>, window_params = [{transform_indices = @transform_0, window_bounds = array<i64: 1, 80, 2>}, {pipeline_mode = #tpu.pipeline_mode<synchronous>, transform_indices = @transform_1, window_bounds = array<i64: 6, 64>}, {pipeline_mode = #tpu.pipeline_mode<synchronous>, transform_indices = @transform_2, window_bounds = array<i64: 80, 64>}, {pipeline_mode = #tpu.pipeline_mode<synchronous>, transform_indices = @transform_3, window_bounds = array<i64: 3, 64, 256>}, {pipeline_mode = #tpu.pipeline_mode<synchronous>, transform_indices = @transform_4, window_bounds = array<i64: 80, 256>}, {pipeline_mode = #tpu.pipeline_mode<synchronous>, transform_indices = @transform_5, window_bounds = array<i64: 2, 80>}, {pipeline_mode = #tpu.pipeline_mode<synchronous>, transform_indices = @transform_6, window_bounds = array<i64: 256, 128>}, {pipeline_mode = #tpu.pipeline_mode<synchronous>, transform_indices = @transform_7, window_bounds = array<i64: 1, 128>}, {transform_indices = @transform_8, window_bounds = array<i64: 1, 2, 128>}]} {
    %c0 = arith.constant 0 : index
    %c0_0 = arith.constant 0 : index
    %c0_1 = arith.constant 0 : index
    %0 = vector.load %arg1[%c0, %c0_0, %c0_1] : memref<1x80x2xf32, #tpu.memory_space<vmem>>, vector<1x80x2xf32>
    %1 = vector.shape_cast %0 : vector<1x80x2xf32> to vector<80x2xf32>
    %2 = vector.extract_strided_slice %1 {offsets = [0, 0], sizes = [80, 1], strides = [1, 1]} : vector<80x2xf32> to vector<80x1xf32>
    %c0_2 = arith.constant 0 : index
    %c0_3 = arith.constant 0 : index
    %3 = vector.load %arg2[%c0_2, %c0_3] : memref<6x64xf32, #tpu.memory_space<vmem>>, vector<1x64xf32>
    %4 = vector.broadcast %2 : vector<80x1xf32> to vector<80x64xf32>
    %5 = vector.broadcast %3 : vector<1x64xf32> to vector<80x64xf32>
    %6 = arith.mulf %4, %5 : vector<80x64xf32>
    %7 = vector.extract_strided_slice %1 {offsets = [0, 1], sizes = [80, 1], strides = [1, 1]} : vector<80x2xf32> to vector<80x1xf32>
    %c1 = arith.constant 1 : index
    %c0_4 = arith.constant 0 : index
    %8 = vector.load %arg2[%c1, %c0_4] : memref<6x64xf32, #tpu.memory_space<vmem>>, vector<1x64xf32>
    %9 = vector.broadcast %7 : vector<80x1xf32> to vector<80x64xf32>
    %10 = vector.broadcast %8 : vector<1x64xf32> to vector<80x64xf32>
    %11 = arith.mulf %9, %10 : vector<80x64xf32>
    %12 = arith.addf %6, %11 : vector<80x64xf32>
    %13 = vector.extract_strided_slice %1 {offsets = [0, 0], sizes = [80, 1], strides = [1, 1]} : vector<80x2xf32> to vector<80x1xf32>
    %c2 = arith.constant 2 : index
    %c0_5 = arith.constant 0 : index
    %14 = vector.load %arg2[%c2, %c0_5] : memref<6x64xf32, #tpu.memory_space<vmem>>, vector<1x64xf32>
    %15 = vector.broadcast %13 : vector<80x1xf32> to vector<80x64xf32>
    %16 = vector.broadcast %14 : vector<1x64xf32> to vector<80x64xf32>
    %17 = arith.mulf %15, %16 : vector<80x64xf32>
    %18 = vector.extract_strided_slice %1 {offsets = [0, 1], sizes = [80, 1], strides = [1, 1]} : vector<80x2xf32> to vector<80x1xf32>
    %c3 = arith.constant 3 : index
    %c0_6 = arith.constant 0 : index
    %19 = vector.load %arg2[%c3, %c0_6] : memref<6x64xf32, #tpu.memory_space<vmem>>, vector<1x64xf32>
    %20 = vector.broadcast %18 : vector<80x1xf32> to vector<80x64xf32>
    %21 = vector.broadcast %19 : vector<1x64xf32> to vector<80x64xf32>
    %22 = arith.mulf %20, %21 : vector<80x64xf32>
    %23 = arith.addf %17, %22 : vector<80x64xf32>
    %24 = vector.extract_strided_slice %1 {offsets = [0, 0], sizes = [80, 1], strides = [1, 1]} : vector<80x2xf32> to vector<80x1xf32>
    %c4 = arith.constant 4 : index
    %c0_7 = arith.constant 0 : index
    %25 = vector.load %arg2[%c4, %c0_7] : memref<6x64xf32, #tpu.memory_space<vmem>>, vector<1x64xf32>
    %26 = vector.broadcast %24 : vector<80x1xf32> to vector<80x64xf32>
    %27 = vector.broadcast %25 : vector<1x64xf32> to vector<80x64xf32>
    %28 = arith.mulf %26, %27 : vector<80x64xf32>
    %29 = vector.extract_strided_slice %1 {offsets = [0, 1], sizes = [80, 1], strides = [1, 1]} : vector<80x2xf32> to vector<80x1xf32>
    %c5 = arith.constant 5 : index
    %c0_8 = arith.constant 0 : index
    %30 = vector.load %arg2[%c5, %c0_8] : memref<6x64xf32, #tpu.memory_space<vmem>>, vector<1x64xf32>
    %31 = vector.broadcast %29 : vector<80x1xf32> to vector<80x64xf32>
    %32 = vector.broadcast %30 : vector<1x64xf32> to vector<80x64xf32>
    %33 = arith.mulf %31, %32 : vector<80x64xf32>
    %34 = arith.addf %28, %33 : vector<80x64xf32>
    %c1_i32 = arith.constant 1 : i32
    %35 = tpu.dynamic_rotate %12 by %c1_i32 dim 0 : vector<80x64xf32>, i32 -> vector<80x64xf32>
    %36 = arith.addf %35, %23 : vector<80x64xf32>
    %c79_i32 = arith.constant 79 : i32
    %37 = tpu.dynamic_rotate %34 by %c79_i32 dim 0 : vector<80x64xf32>, i32 -> vector<80x64xf32>
    %38 = arith.addf %36, %37 : vector<80x64xf32>
    %c0_9 = arith.constant 0 : index
    %c0_10 = arith.constant 0 : index
    %39 = vector.load %arg3[%c0_9, %c0_10] : memref<80x64xf32, #tpu.memory_space<vmem>>, vector<80x64xf32>
    %40 = arith.addf %38, %39 : vector<80x64xf32>
    %cst = arith.constant 0.000000e+00 : f32
    %41 = vector.broadcast %cst : f32 to vector<80x64xf32>
    %42 = arith.maximumf %40, %41 : vector<80x64xf32>
    %c1_i32_11 = arith.constant 1 : i32
    %43 = tpu.dynamic_rotate %42 by %c1_i32_11 dim 0 : vector<80x64xf32>, i32 -> vector<80x64xf32>
    %c79_i32_12 = arith.constant 79 : i32
    %44 = tpu.dynamic_rotate %42 by %c79_i32_12 dim 0 : vector<80x64xf32>, i32 -> vector<80x64xf32>
    %c0_13 = arith.constant 0 : index
    %c0_14 = arith.constant 0 : index
    %c0_15 = arith.constant 0 : index
    %45 = vector.load %arg4[%c0_13, %c0_14, %c0_15] : memref<3x64x256xf32, #tpu.memory_space<vmem>>, vector<1x64x256xf32>
    %46 = vector.shape_cast %45 : vector<1x64x256xf32> to vector<64x256xf32>
    %cst_16 = arith.constant dense<0.000000e+00> : vector<80x256xf32>
    %47 = tpu.matmul %43, %46, %cst_16 {dimension_numbers = #tpu.dot_dimension_numbers<[1], [0], [0], [1], [0, 0, 1, 1], [], []>} : vector<80x64xf32>, vector<64x256xf32>, vector<80x256xf32> -> vector<80x256xf32>
    %c1_17 = arith.constant 1 : index
    %c0_18 = arith.constant 0 : index
    %c0_19 = arith.constant 0 : index
    %48 = vector.load %arg4[%c1_17, %c0_18, %c0_19] : memref<3x64x256xf32, #tpu.memory_space<vmem>>, vector<1x64x256xf32>
    %49 = vector.shape_cast %48 : vector<1x64x256xf32> to vector<64x256xf32>
    %cst_20 = arith.constant dense<0.000000e+00> : vector<80x256xf32>
    %50 = tpu.matmul %42, %49, %cst_20 {dimension_numbers = #tpu.dot_dimension_numbers<[1], [0], [0], [1], [0, 0, 1, 1], [], []>} : vector<80x64xf32>, vector<64x256xf32>, vector<80x256xf32> -> vector<80x256xf32>
    %51 = arith.addf %47, %50 : vector<80x256xf32>
    %c2_21 = arith.constant 2 : index
    %c0_22 = arith.constant 0 : index
    %c0_23 = arith.constant 0 : index
    %52 = vector.load %arg4[%c2_21, %c0_22, %c0_23] : memref<3x64x256xf32, #tpu.memory_space<vmem>>, vector<1x64x256xf32>
    %53 = vector.shape_cast %52 : vector<1x64x256xf32> to vector<64x256xf32>
    %cst_24 = arith.constant dense<0.000000e+00> : vector<80x256xf32>
    %54 = tpu.matmul %44, %53, %cst_24 {dimension_numbers = #tpu.dot_dimension_numbers<[1], [0], [0], [1], [0, 0, 1, 1], [], []>} : vector<80x64xf32>, vector<64x256xf32>, vector<80x256xf32> -> vector<80x256xf32>
    %55 = arith.addf %51, %54 : vector<80x256xf32>
    %c0_25 = arith.constant 0 : index
    %c0_26 = arith.constant 0 : index
    %56 = vector.load %arg5[%c0_25, %c0_26] : memref<80x256xf32, #tpu.memory_space<vmem>>, vector<80x256xf32>
    %57 = arith.addf %55, %56 : vector<80x256xf32>
    %cst_27 = arith.constant 0.000000e+00 : f32
    %58 = vector.broadcast %cst_27 : f32 to vector<80x256xf32>
    %59 = arith.maximumf %57, %58 : vector<80x256xf32>
    %c0_28 = arith.constant 0 : index
    %c0_29 = arith.constant 0 : index
    %60 = vector.load %arg6[%c0_28, %c0_29] : memref<2x80xf32, #tpu.memory_space<vmem>>, vector<2x80xf32>
    %cst_30 = arith.constant dense<0.000000e+00> : vector<2x256xf32>
    %61 = tpu.matmul %60, %59, %cst_30 {dimension_numbers = #tpu.dot_dimension_numbers<[1], [0], [0], [1], [0, 0, 1, 1], [], []>} : vector<2x80xf32>, vector<80x256xf32>, vector<2x256xf32> -> vector<2x256xf32>
    %c0_31 = arith.constant 0 : index
    %c0_32 = arith.constant 0 : index
    %62 = vector.load %arg7[%c0_31, %c0_32] : memref<256x128xf32, #tpu.memory_space<vmem>>, vector<256x128xf32>
    %cst_33 = arith.constant dense<0.000000e+00> : vector<2x128xf32>
    %63 = tpu.matmul %61, %62, %cst_33 {dimension_numbers = #tpu.dot_dimension_numbers<[1], [0], [0], [1], [0, 0, 1, 1], [], []>} : vector<2x256xf32>, vector<256x128xf32>, vector<2x128xf32> -> vector<2x128xf32>
    %c0_34 = arith.constant 0 : index
    %c0_35 = arith.constant 0 : index
    %64 = vector.load %arg8[%c0_34, %c0_35] : memref<1x128xf32, #tpu.memory_space<vmem>>, vector<1x128xf32>
    %65 = vector.broadcast %64 : vector<1x128xf32> to vector<2x128xf32>
    %66 = arith.addf %63, %65 : vector<2x128xf32>
    %c0_36 = arith.constant 0 : index
    %c0_37 = arith.constant 0 : index
    %c0_38 = arith.constant 0 : index
    %67 = vector.load %arg9[%c0_36, %c0_37, %c0_38] : memref<1x2x128xf32, #tpu.memory_space<vmem>>, vector<1x2x128xf32>
    %68 = vector.shape_cast %67 : vector<1x2x128xf32> to vector<2x128xf32>
    %69 = vector.shape_cast %66 : vector<2x128xf32> to vector<1x2x128xf32>
    tpu.vector_store %arg9[%c0_36, %c0_37, %c0_38], %69 {strides = array<i32>} : memref<1x2x128xf32, #tpu.memory_space<vmem>>, vector<1x2x128xf32>,
    return
  }
  func.func @transform_0(%arg0: i32) -> (i32, i32, i32) {
    %c0_i32 = arith.constant 0 : i32
    %c0_i32_0 = arith.constant 0 : i32
    %c0_i32_1 = arith.constant 0 : i32
    return %arg0, %c0_i32, %c0_i32_0 : i32, i32, i32
  }
  func.func @transform_1(%arg0: i32) -> (i32, i32) {
    %c0_i32 = arith.constant 0 : i32
    %c0_i32_0 = arith.constant 0 : i32
    %c0_i32_1 = arith.constant 0 : i32
    return %c0_i32, %c0_i32_0 : i32, i32
  }
  func.func @transform_2(%arg0: i32) -> (i32, i32) {
    %c0_i32 = arith.constant 0 : i32
    %c0_i32_0 = arith.constant 0 : i32
    %c0_i32_1 = arith.constant 0 : i32
    return %c0_i32, %c0_i32_0 : i32, i32
  }
  func.func @transform_3(%arg0: i32) -> (i32, i32, i32) {
    %c0_i32 = arith.constant 0 : i32
    %c0_i32_0 = arith.constant 0 : i32
    %c0_i32_1 = arith.constant 0 : i32
    %c0_i32_2 = arith.constant 0 : i32
    return %c0_i32, %c0_i32_0, %c0_i32_1 : i32, i32, i32
  }
  func.func @transform_4(%arg0: i32) -> (i32, i32) {
    %c0_i32 = arith.constant 0 : i32
    %c0_i32_0 = arith.constant 0 : i32
    %c0_i32_1 = arith.constant 0 : i32
    return %c0_i32, %c0_i32_0 : i32, i32
  }
  func.func @transform_5(%arg0: i32) -> (i32, i32) {
    %c0_i32 = arith.constant 0 : i32
    %c0_i32_0 = arith.constant 0 : i32
    %c0_i32_1 = arith.constant 0 : i32
    return %c0_i32, %c0_i32_0 : i32, i32
  }
  func.func @transform_6(%arg0: i32) -> (i32, i32) {
    %c0_i32 = arith.constant 0 : i32
    %c0_i32_0 = arith.constant 0 : i32
    %c0_i32_1 = arith.constant 0 : i32
    return %c0_i32, %c0_i32_0 : i32, i32
  }
  func.func @transform_7(%arg0: i32) -> (i32, i32) {
    %c0_i32 = arith.constant 0 : i32
    %c0_i32_0 = arith.constant 0 : i32
    %c0_i32_1 = arith.constant 0 : i32
    return %c0_i32, %c0_i32_0 : i32, i32
  }
  func.func @transform_8(%arg0: i32) -> (i32, i32, i32) {
    %c0_i32 = arith.constant 0 : i32
    %c0_i32_0 = arith.constant 0 : i32
    %c0_i32_1 = arith.constant 0 : i32
    return %arg0, %c0_i32, %c0_i32_0 : i32, i32, i32
  }
}

</mosaic_0001>

<llo_original>
// kernel: mlp_forward.1
$region0: #{mlp_forward.1}
  #allocation0 [shape = 'u32[]', space=smem, size = 0x4, offset = 0x4, fixed_abs, tag = 'smem constant byte address 0x4 - core index']
  #allocation1 [shape = 'u32[144,128]{1,0:T(1,128)}', space=vmem, size = 0x12000, scoped, tag = 'internal scratch']
  %s0 = inlined_call_operand.vmem [shape: f32[2,80,2], index: 0, kind: input, shape index: {}]
  %s1 = inlined_call_operand.vmem [shape: f32[6,64], index: 1, kind: input, shape index: {}]
  %s2 = inlined_call_operand.vmem [shape: f32[80,64], index: 2, kind: input, shape index: {}]
  %s3 = inlined_call_operand.vmem [shape: f32[3,64,256], index: 3, kind: input, shape index: {}]
  %s4 = inlined_call_operand.vmem [shape: f32[80,256], index: 4, kind: input, shape index: {}]
  %s5 = inlined_call_operand.vmem [shape: f32[2,80], index: 5, kind: input, shape index: {}]
  %s6 = inlined_call_operand.vmem [shape: f32[256,128], index: 6, kind: input, shape index: {}]
  %s7 = inlined_call_operand.vmem [shape: f32[1,128], index: 7, kind: input, shape index: {}]
  %s8 = inlined_call_operand.hbm [shape: f32[2,2,128], index: 8, kind: output, shape index: {}]
  %s9 = sld [smem:[#allocation0]]
  $region65: #{mlp_forward.1} parent=0
    _
  %s11 = ssub.s32 1, %s9
  %s12 = scalar_select 0, %s11, %s9
  $region1: #{mlp_forward.1} parent=0
    #allocation2 [shape = 'u8[2048]{0}', space=vmem, size = 0x800, scoped, tag = 'output window, operand 0']
    #allocation3 [shape = 's32[2]{0}', space=sflag, size = 0x8, scoped, tag = 'scoped memory for mlp_forward.1']
    %13 = vsyncpa [#allocation3], 0
    %s14 = scalar_lea.sflag [#allocation3], 1
    %15 = vsyncpa %s14, 0
    loop: start=0, step=1, limit=4
    $region2: #{mlp_forward.1} parent=1 // loop_pre_header
      _
    $region3: #{mlp_forward.1} parent=1 // loop_header
      %s17 = sphi 0, %s21
      %p18 = scmp.ge.s32.totalorder %s17, 4
      %s27 = sphi 0, %s29
      %s30 = sphi 0, %s27
      %s31 = sphi 0, %s30
      %s47 = sphi 0, %s31
      %s51 = sphi 0, %s51
      %s53 = sphi 0, %s51
      %s54 = sphi 0, %s53
      %s68 = sphi 0, %s54
      %s72 = sphi 0, %s72
      %s74 = sphi 0, %s72
      %s75 = sphi 0, %s74
      %s89 = sphi 0, %s75
      %s93 = sphi 0, %s93
      %s95 = sphi 0, %s93
      %s96 = sphi 0, %s95
      %s110 = sphi 0, %s96
      %s114 = sphi 0, %s114
      %s116 = sphi 0, %s114
      %s117 = sphi 0, %s116
      %s131 = sphi 0, %s117
      %s135 = sphi 0, %s135
      %s137 = sphi 0, %s135
      %s138 = sphi 0, %s137
      %s152 = sphi 0, %s138
      %s156 = sphi 0, %s156
      %s158 = sphi 0, %s156
      %s159 = sphi 0, %s158
      %s173 = sphi 0, %s159
      %s177 = sphi 0, %s177
      %s179 = sphi 0, %s177
      %s180 = sphi 0, %s179
      %s194 = sphi 0, %s180
      %s200 = sphi 0, %s202
      %s203 = sphi 0, %s200
      %s204 = sphi 0, %s203
      %s220 = sphi 0, %s204
    $region4: #{mlp_forward.1} parent=1 // loop_header_branch
      %20 = sbr.rel (%p18) target = $region8
    $region5: #{mlp_forward.1} parent=1 // loop_body
      %s22 = ssub.s32 %s17, 1
      %s23 = ssub.s32 %s17, 2
      %s24 = sadd.s32 %s17, 1
      %s25 = ssub.s32 %s17, %s24
      %p26 = scmp.eq.s32.totalorder %s25, 0
      %s28 = sadd.s32 %s27, 1
      %s29 = scalar_select %p26, %s27, %s28
      %p32 = pneg %p26
      %p33 = scmp.eq.s32.totalorder %s17, 1
      %p34 = por %p32, %p33
      %p35 = scmp.ne.s32.totalorder %s27, %s30
      %p36 = scmp.eq.s32.totalorder %s17, 0
      %p37 = por %p35, %p36
      %p38 = scmp.ne.s32.totalorder %s27, %s30
      %p39 = scmp.eq.s32.totalorder %s22, 1
      %p40 = por %p38, %p39
      %p41 = scmp.ne.s32.totalorder %s30, %s31
      %p42 = scmp.eq.s32.totalorder %s22, 0
      %p43 = por %p41, %p42
      %p44 = scmp.ne.s32.totalorder %s30, %s31
      %p45 = scmp.eq.s32.totalorder %s23, 1
      %p46 = por %p44, %p45
      %p48 = scmp.ne.s32.totalorder %s31, %s47
      %p49 = scmp.eq.s32.totalorder %s23, 0
      %p50 = por %p48, %p49
      %s52 = sadd.s32 %s51, 1
      %p55 = scmp.eq.s32.totalorder %s17, 1
      %p56 = scmp.ne.s32.totalorder %s51, %s53
      %p57 = scmp.eq.s32.totalorder %s17, 0
      %p58 = por %p56, %p57
      %p59 = scmp.ne.s32.totalorder %s51, %s53
      %p60 = scmp.eq.s32.totalorder %s22, 1
      %p61 = por %p59, %p60
      %p62 = scmp.ne.s32.totalorder %s53, %s54
      %p63 = scmp.eq.s32.totalorder %s22, 0
      %p64 = por %p62, %p63
      %p65 = scmp.ne.s32.totalorder %s53, %s54
      %p66 = scmp.eq.s32.totalorder %s23, 1
      %p67 = por %p65, %p66
      %p69 = scmp.ne.s32.totalorder %s54, %s68
      %p70 = scmp.eq.s32.totalorder %s23, 0
      %p71 = por %p69, %p70
      %s73 = sadd.s32 %s72, 1
      %p76 = scmp.eq.s32.totalorder %s17, 1
      %p77 = scmp.ne.s32.totalorder %s72, %s74
      %p78 = scmp.eq.s32.totalorder %s17, 0
      %p79 = por %p77, %p78
      %p80 = scmp.ne.s32.totalorder %s72, %s74
      %p81 = scmp.eq.s32.totalorder %s22, 1
      %p82 = por %p80, %p81
      %p83 = scmp.ne.s32.totalorder %s74, %s75
      %p84 = scmp.eq.s32.totalorder %s22, 0
      %p85 = por %p83, %p84
      %p86 = scmp.ne.s32.totalorder %s74, %s75
      %p87 = scmp.eq.s32.totalorder %s23, 1
      %p88 = por %p86, %p87
      %p90 = scmp.ne.s32.totalorder %s75, %s89
      %p91 = scmp.eq.s32.totalorder %s23, 0
      %p92 = por %p90, %p91
      %s94 = sadd.s32 %s93, 1
      %p97 = scmp.eq.s32.totalorder %s17, 1
      %p98 = scmp.ne.s32.totalorder %s93, %s95
      %p99 = scmp.eq.s32.totalorder %s17, 0
      %p100 = por %p98, %p99
      %p101 = scmp.ne.s32.totalorder %s93, %s95
      %p102 = scmp.eq.s32.totalorder %s22, 1
      %p103 = por %p101, %p102
      %p104 = scmp.ne.s32.totalorder %s95, %s96
      %p105 = scmp.eq.s32.totalorder %s22, 0
      %p106 = por %p104, %p105
      %p107 = scmp.ne.s32.totalorder %s95, %s96
      %p108 = scmp.eq.s32.totalorder %s23, 1
      %p109 = por %p107, %p108
      %p111 = scmp.ne.s32.totalorder %s96, %s110
      %p112 = scmp.eq.s32.totalorder %s23, 0
      %p113 = por %p111, %p112
      %s115 = sadd.s32 %s114, 1
      %p118 = scmp.eq.s32.totalorder %s17, 1
      %p119 = scmp.ne.s32.totalorder %s114, %s116
      %p120 = scmp.eq.s32.totalorder %s17, 0
      %p121 = por %p119, %p120
      %p122 = scmp.ne.s32.totalorder %s114, %s116
      %p123 = scmp.eq.s32.totalorder %s22, 1
      %p124 = por %p122, %p123
      %p125 = scmp.ne.s32.totalorder %s116, %s117
      %p126 = scmp.eq.s32.totalorder %s22, 0
      %p127 = por %p125, %p126
      %p128 = scmp.ne.s32.totalorder %s116, %s117
      %p129 = scmp.eq.s32.totalorder %s23, 1
      %p130 = por %p128, %p129
      %p132 = scmp.ne.s32.totalorder %s117, %s131
      %p133 = scmp.eq.s32.totalorder %s23, 0
      %p134 = por %p132, %p133
      %s136 = sadd.s32 %s135, 1
      %p139 = scmp.eq.s32.totalorder %s17, 1
      %p140 = scmp.ne.s32.totalorder %s135, %s137
      %p141 = scmp.eq.s32.totalorder %s17, 0
      %p142 = por %p140, %p141
      %p143 = scmp.ne.s32.totalorder %s135, %s137
      %p144 = scmp.eq.s32.totalorder %s22, 1
      %p145 = por %p143, %p144
      %p146 = scmp.ne.s32.totalorder %s137, %s138
      %p147 = scmp.eq.s32.totalorder %s22, 0
      %p148 = por %p146, %p147
      %p149 = scmp.ne.s32.totalorder %s137, %s138
      %p150 = scmp.eq.s32.totalorder %s23, 1
      %p151 = por %p149, %p150
      %p153 = scmp.ne.s32.totalorder %s138, %s152
      %p154 = scmp.eq.s32.totalorder %s23, 0
      %p155 = por %p153, %p154
      %s157 = sadd.s32 %s156, 1
      %p160 = scmp.eq.s32.totalorder %s17, 1
      %p161 = scmp.ne.s32.totalorder %s156, %s158
      %p162 = scmp.eq.s32.totalorder %s17, 0
      %p163 = por %p161, %p162
      %p164 = scmp.ne.s32.totalorder %s156, %s158
      %p165 = scmp.eq.s32.totalorder %s22, 1
      %p166 = por %p164, %p165
      %p167 = scmp.ne.s32.totalorder %s158, %s159
      %p168 = scmp.eq.s32.totalorder %s22, 0
      %p169 = por %p167, %p168
      %p170 = scmp.ne.s32.totalorder %s158, %s159
      %p171 = scmp.eq.s32.totalorder %s23, 1
      %p172 = por %p170, %p171
      %p174 = scmp.ne.s32.totalorder %s159, %s173
      %p175 = scmp.eq.s32.totalorder %s23, 0
      %p176 = por %p174, %p175
      %s178 = sadd.s32 %s177, 1
      %p181 = scmp.eq.s32.totalorder %s17, 1
      %p182 = scmp.ne.s32.totalorder %s177, %s179
      %p183 = scmp.eq.s32.totalorder %s17, 0
      %p184 = por %p182, %p183
      %p185 = scmp.ne.s32.totalorder %s177, %s179
      %p186 = scmp.eq.s32.totalorder %s22, 1
      %p187 = por %p185, %p186
      %p188 = scmp.ne.s32.totalorder %s179, %s180
      %p189 = scmp.eq.s32.totalorder %s22, 0
      %p190 = por %p188, %p189
      %p191 = scmp.ne.s32.totalorder %s179, %s180
      %p192 = scmp.eq.s32.totalorder %s23, 1
      %p193 = por %p191, %p192
      %p195 = scmp.ne.s32.totalorder %s180, %s194
      %p196 = scmp.eq.s32.totalorder %s23, 0
      %p197 = por %p195, %p196
      %s198 = ssub.s32 %s17, %s24
      %p199 = scmp.eq.s32.totalorder %s198, 0
      %s201 = sadd.s32 %s200, 1
      %s202 = scalar_select %p199, %s200, %s201
      %p205 = pneg %p199
      %p206 = scmp.eq.s32.totalorder %s17, 1
      %p207 = por %p205, %p206
      %p208 = scmp.ne.s32.totalorder %s200, %s203
      %p209 = scmp.eq.s32.totalorder %s17, 0
      %p210 = por %p208, %p209
      %p211 = scmp.ne.s32.totalorder %s200, %s203
      %p212 = scmp.eq.s32.totalorder %s22, 1
      %p213 = por %p211, %p212
      %p214 = scmp.ne.s32.totalorder %s203, %s204
      %p215 = scmp.eq.s32.totalorder %s22, 0
      %p216 = por %p214, %p215
      %p217 = scmp.ne.s32.totalorder %s203, %s204
      %p218 = scmp.eq.s32.totalorder %s23, 1
      %p219 = por %p217, %p218
      %p221 = scmp.ne.s32.totalorder %s204, %s220
      %p222 = scmp.eq.s32.totalorder %s23, 0
      %p223 = por %p221, %p222
      %p224 = scmp.le.s32.totalorder 1, %s17
      %p225 = scmp.lt.s32.totalorder %s17, 3
      %p226 = pnand %p224, %p225
      %p227 = pneg %p226
      // Predicated region
      $region9: #{mlp_forward.1} parent=5 // pred_check
        _
      $region10: #{mlp_forward.1} parent=5 // pred_check_branch
        %229 = sbr.rel (%p226) target = $region12
      $region11: #{mlp_forward.1} parent=5 // pred_region
        %s230 = ssub.s32 %s17, 1
        // Predicated region
        $region13: #{mlp_forward.1} parent=11 // pred_check
          %p231 = pneg %p64
        $region14: #{mlp_forward.1} parent=11 // pred_check_branch
          %233 = sbr.rel (%p231) target = $region16
        $region15: #{mlp_forward.1} parent=11 // pred_region
          _
        $region16: #{mlp_forward.1} parent=11 // pred_fallthru
          _
        // Predicated region
        $region17: #{mlp_forward.1} parent=11 // pred_check
          %p234 = pneg %p85
        $region18: #{mlp_forward.1} parent=11 // pred_check_branch
          %236 = sbr.rel (%p234) target = $region20
        $region19: #{mlp_forward.1} parent=11 // pred_region
          _
        $region20: #{mlp_forward.1} parent=11 // pred_fallthru
          _
        // Predicated region
        $region21: #{mlp_forward.1} parent=11 // pred_check
          %p237 = pneg %p106
        $region22: #{mlp_forward.1} parent=11 // pred_check_branch
          %239 = sbr.rel (%p237) target = $region24
        $region23: #{mlp_forward.1} parent=11 // pred_region
          _
        $region24: #{mlp_forward.1} parent=11 // pred_fallthru
          _
        // Predicated region
        $region25: #{mlp_forward.1} parent=11 // pred_check
          %p240 = pneg %p127
        $region26: #{mlp_forward.1} parent=11 // pred_check_branch
          %242 = sbr.rel (%p240) target = $region28
        $region27: #{mlp_forward.1} parent=11 // pred_region
          _
        $region28: #{mlp_forward.1} parent=11 // pred_fallthru
          _
        // Predicated region
        $region29: #{mlp_forward.1} parent=11 // pred_check
          %p243 = pneg %p148
        $region30: #{mlp_forward.1} parent=11 // pred_check_branch
          %245 = sbr.rel (%p243) target = $region32
        $region31: #{mlp_forward.1} parent=11 // pred_region
          _
        $region32: #{mlp_forward.1} parent=11 // pred_fallthru
          _
        // Predicated region
        $region33: #{mlp_forward.1} parent=11 // pred_check
          %p246 = pneg %p169
        $region34: #{mlp_forward.1} parent=11 // pred_check_branch
          %248 = sbr.rel (%p246) target = $region36
        $region35: #{mlp_forward.1} parent=11 // pred_region
          _
        $region36: #{mlp_forward.1} parent=11 // pred_fallthru
          _
        // Predicated region
        $region37: #{mlp_forward.1} parent=11 // pred_check
          %p249 = pneg %p190
        $region38: #{mlp_forward.1} parent=11 // pred_check_branch
          %251 = sbr.rel (%p249) target = $region40
        $region39: #{mlp_forward.1} parent=11 // pred_region
          _
        $region40: #{mlp_forward.1} parent=11 // pred_fallthru
          _
      $region12: #{mlp_forward.1} parent=5 // pred_fallthru
        _
      %p252 = scmp.lt.s32.totalorder %s17, 2
      // Predicated region
      $region41: #{mlp_forward.1} parent=5 // pred_check
        %p253 = pneg %p252
      $region42: #{mlp_forward.1} parent=5 // pred_check_branch
        %255 = sbr.rel (%p253) target = $region44
      $region43: #{mlp_forward.1} parent=5 // pred_region
        // Predicated region
        $region45: #{mlp_forward.1} parent=43 // pred_check
          %p256 = pneg %p37
        $region46: #{mlp_forward.1} parent=43 // pred_check_branch
          %258 = sbr.rel (%p256) target = $region48
        $region47: #{mlp_forward.1} parent=43 // pred_region
          %p259 = scmp.lt.s32.totalorder %s17, 1
          %s260 = scalar_select %p259, %s17, 1
          %s261 = smul.addr %s260, 10
          %s262 = smul.addr %s261, 8
          %s263 = scalar_lea.vmem %s0, %s262
        $region48: #{mlp_forward.1} parent=43 // pred_fallthru
          _
      $region44: #{mlp_forward.1} parent=5 // pred_fallthru
        _
      %p264 = scmp.le.s32.totalorder 1, %s17
      %p265 = scmp.lt.s32.totalorder %s17, 3
      %p266 = pnand %p264, %p265
      %p267 = pneg %p266
      // Predicated region
      $region49: #{mlp_forward.1} parent=5 // pred_check
        _
      $region50: #{mlp_forward.1} parent=5 // pred_check_branch
        %269 = sbr.rel (%p266) target = $region52
      $region51: #{mlp_forward.1} parent=5 // pred_region
        %s270 = ssub.s32 %s17, 1
        %p271 = scmp.lt.s32.totalorder %s22, 1
        %s272 = scalar_select %p271, %s22, 1
        %s273 = smul.addr %s272, 10
        %s274 = smul.addr %s273, 8
        %s275 = scalar_lea.vmem %s0, %s274
        %p276 = pneg %p43
        %p277 = pneg %p40
        %p278 = pneg %p64
        %p279 = pneg %p61
        %p280 = pneg %p85
        %p281 = pneg %p82
        %p282 = pneg %p106
        %p283 = pneg %p103
        %p284 = pneg %p127
        %p285 = pneg %p124
        %p286 = pneg %p148
        %p287 = pneg %p145
        %p288 = pneg %p169
        %p289 = pneg %p166
        %p290 = pneg %p190
        %p291 = pneg %p187
        %p292 = pneg %p216
        %p293 = pneg %p213
        %s294 = sand.u32 %s203, 1
        %s295 = scalar_lea.sflag [#allocation3], %s294
        %s296 = sand.u32 %s203, 1
        %s297 = smul.addr %s296, 2
        %s298 = scalar_lea.vmem [#allocation2], %s297
        %p299 = scmp.lt.s32.totalorder %s22, 1
        %s300 = scalar_select %p299, %s22, 1
        %s301 = smul.addr %s300, 10
        %s302 = smul.addr %s301, 8
        %s303 = scalar_lea.vmem %s0, %s302
        %v304 = vld [vmem:[%s303] sm:$0xff]
        %v305 = vld [vmem:[%s303 + $0x8] sm:$0xff]
        %v306 = vld [vmem:[%s303 + $0x10] sm:$0xff]
        %v307 = vld [vmem:[%s303 + $0x18] sm:$0xff]
        %v308 = vld [vmem:[%s303 + $0x20] sm:$0xff]
        %v309 = vld [vmem:[%s303 + $0x28] sm:$0xff]
        %v310 = vld [vmem:[%s303 + $0x30] sm:$0xff]
        %v311 = vld [vmem:[%s303 + $0x38] sm:$0xff]
        %v312 = vld [vmem:[%s303 + $0x40] sm:$0xff]
        %v313 = vld [vmem:[%s303 + $0x48] sm:$0xff]
        %v314 = vld [vmem:[%s1] sm:$0x1]
        %316 = vset.pattern.permute.xlu0 0
        %317 = vperm.xlu0 %316, %v304
        %v318 = vpop.permute.xlu0 %317
        %321 = vset.pattern.permute.xlu0 0
        %322 = vperm.xlu0 %321, %v305
        %v323 = vpop.permute.xlu0 %322
        %326 = vset.pattern.permute.xlu0 0
        %327 = vperm.xlu0 %326, %v306
        %v328 = vpop.permute.xlu0 %327
        %331 = vset.pattern.permute.xlu0 0
        %332 = vperm.xlu0 %331, %v307
        %v333 = vpop.permute.xlu0 %332
        %336 = vset.pattern.permute.xlu0 0
        %337 = vperm.xlu0 %336, %v308
        %v338 = vpop.permute.xlu0 %337
        %341 = vset.pattern.permute.xlu0 0
        %342 = vperm.xlu0 %341, %v309
        %v343 = vpop.permute.xlu0 %342
        %346 = vset.pattern.permute.xlu0 0
        %347 = vperm.xlu0 %346, %v310
        %v348 = vpop.permute.xlu0 %347
        %351 = vset.pattern.permute.xlu0 0
        %352 = vperm.xlu0 %351, %v311
        %v353 = vpop.permute.xlu0 %352
        %356 = vset.pattern.permute.xlu0 0
        %357 = vperm.xlu0 %356, %v312
        %v358 = vpop.permute.xlu0 %357
        %361 = vset.pattern.permute.xlu0 0
        %362 = vperm.xlu0 %361, %v313
        %v363 = vpop.permute.xlu0 %362
        %v365 = vlaneseq
        %v366 = vshrl.u32 %v365, 7
        %v367 = vsub.s32 0, %v366
        %v368 = vrot.slane %v314, %v367
        %v369 = vmul.f32 %v318, %v368
        %v370 = vmul.f32 %v323, %v368
        %v371 = vmul.f32 %v328, %v368
        %v372 = vmul.f32 %v333, %v368
        %v373 = vmul.f32 %v338, %v368
        %v374 = vmul.f32 %v343, %v368
        %v375 = vmul.f32 %v348, %v368
        %v376 = vmul.f32 %v353, %v368
        %v377 = vmul.f32 %v358, %v368
        %v378 = vmul.f32 %v363, %v368
        %v379 = vld [vmem:[%s1 + $0x1] sm:$0x1]
        %380 = vset.pattern.permute.xlu0 1
        %381 = vperm.xlu0 %380, %v304
        %v382 = vpop.permute.xlu0 %381
        %384 = vset.pattern.permute.xlu0 1
        %385 = vperm.xlu0 %384, %v305
        %v386 = vpop.permute.xlu0 %385
        %388 = vset.pattern.permute.xlu0 1
        %389 = vperm.xlu0 %388, %v306
        %v390 = vpop.permute.xlu0 %389
        %392 = vset.pattern.permute.xlu0 1
        %393 = vperm.xlu0 %392, %v307
        %v394 = vpop.permute.xlu0 %393
        %396 = vset.pattern.permute.xlu0 1
        %397 = vperm.xlu0 %396, %v308
        %v398 = vpop.permute.xlu0 %397
        %400 = vset.pattern.permute.xlu0 1
        %401 = vperm.xlu0 %400, %v309
        %v402 = vpop.permute.xlu0 %401
        %404 = vset.pattern.permute.xlu0 1
        %405 = vperm.xlu0 %404, %v310
        %v406 = vpop.permute.xlu0 %405
        %408 = vset.pattern.permute.xlu0 1
        %409 = vperm.xlu0 %408, %v311
        %v410 = vpop.permute.xlu0 %409
        %412 = vset.pattern.permute.xlu0 1
        %413 = vperm.xlu0 %412, %v312
        %v414 = vpop.permute.xlu0 %413
        %416 = vset.pattern.permute.xlu0 1
        %417 = vperm.xlu0 %416, %v313
        %v418 = vpop.permute.xlu0 %417
        %v420 = vlaneseq
        %v421 = vshrl.u32 %v420, 7
        %v422 = vsub.s32 0, %v421
        %v423 = vrot.slane %v379, %v422
        %v424 = vmul.f32 %v382, %v423
        %v425 = vmul.f32 %v386, %v423
        %v426 = vmul.f32 %v390, %v423
        %v427 = vmul.f32 %v394, %v423
        %v428 = vmul.f32 %v398, %v423
        %v429 = vmul.f32 %v402, %v423
        %v430 = vmul.f32 %v406, %v423
        %v431 = vmul.f32 %v410, %v423
        %v432 = vmul.f32 %v414, %v423
        %v433 = vmul.f32 %v418, %v423
        %v434 = vadd.f32 %v369, %v424
        %v435 = vadd.f32 %v370, %v425
        %v436 = vadd.f32 %v371, %v426
        %v437 = vadd.f32 %v372, %v427
        %v438 = vadd.f32 %v373, %v428
        %v439 = vadd.f32 %v374, %v429
        %v440 = vadd.f32 %v375, %v430
        %v441 = vadd.f32 %v376, %v431
        %v442 = vadd.f32 %v377, %v432
        %v443 = vadd.f32 %v378, %v433
        %v444 = vld [vmem:[%s1 + $0x2] sm:$0x1]
        %v445 = vlaneseq
        %v446 = vshrl.u32 %v445, 7
        %v447 = vsub.s32 0, %v446
        %v448 = vrot.slane %v444, %v447
        %v449 = vmul.f32 %v318, %v448
        %v450 = vmul.f32 %v323, %v448
        %v451 = vmul.f32 %v328, %v448
        %v452 = vmul.f32 %v333, %v448
        %v453 = vmul.f32 %v338, %v448
        %v454 = vmul.f32 %v343, %v448
        %v455 = vmul.f32 %v348, %v448
        %v456 = vmul.f32 %v353, %v448
        %v457 = vmul.f32 %v358, %v448
        %v458 = vmul.f32 %v363, %v448
        %v459 = vld [vmem:[%s1 + $0x3] sm:$0x1]
        %v460 = vlaneseq
        %v461 = vshrl.u32 %v460, 7
        %v462 = vsub.s32 0, %v461
        %v463 = vrot.slane %v459, %v462
        %v464 = vmul.f32 %v382, %v463
        %v465 = vmul.f32 %v386, %v463
        %v466 = vmul.f32 %v390, %v463
        %v467 = vmul.f32 %v394, %v463
        %v468 = vmul.f32 %v398, %v463
        %v469 = vmul.f32 %v402, %v463
        %v470 = vmul.f32 %v406, %v463
        %v471 = vmul.f32 %v410, %v463
        %v472 = vmul.f32 %v414, %v463
        %v473 = vmul.f32 %v418, %v463
        %v474 = vadd.f32 %v449, %v464
        %v475 = vadd.f32 %v450, %v465
        %v476 = vadd.f32 %v451, %v466
        %v477 = vadd.f32 %v452, %v467
        %v478 = vadd.f32 %v453, %v468
        %v479 = vadd.f32 %v454, %v469
        %v480 = vadd.f32 %v455, %v470
        %v481 = vadd.f32 %v456, %v471
        %v482 = vadd.f32 %v457, %v472
        %v483 = vadd.f32 %v458, %v473
        %v484 = vld [vmem:[%s1 + $0x4] sm:$0x1]
        %v485 = vlaneseq
        %v486 = vshrl.u32 %v485, 7
        %v487 = vsub.s32 0, %v486
        %v488 = vrot.slane %v484, %v487
        %v489 = vmul.f32 %v318, %v488
        %v490 = vmul.f32 %v323, %v488
        %v491 = vmul.f32 %v328, %v488
        %v492 = vmul.f32 %v333, %v488
        %v493 = vmul.f32 %v338, %v488
        %v494 = vmul.f32 %v343, %v488
        %v495 = vmul.f32 %v348, %v488
        %v496 = vmul.f32 %v353, %v488
        %v497 = vmul.f32 %v358, %v488
        %v498 = vmul.f32 %v363, %v488
        %v499 = vld [vmem:[%s1 + $0x5] sm:$0x1]
        %v500 = vlaneseq
        %v501 = vshrl.u32 %v500, 7
        %v502 = vsub.s32 0, %v501
        %v503 = vrot.slane %v499, %v502
        %v504 = vmul.f32 %v382, %v503
        %v505 = vmul.f32 %v386, %v503
        %v506 = vmul.f32 %v390, %v503
        %v507 = vmul.f32 %v394, %v503
        %v508 = vmul.f32 %v398, %v503
        %v509 = vmul.f32 %v402, %v503
        %v510 = vmul.f32 %v406, %v503
        %v511 = vmul.f32 %v410, %v503
        %v512 = vmul.f32 %v414, %v503
        %v513 = vmul.f32 %v418, %v503
        %v514 = vadd.f32 %v489, %v504
        %v515 = vadd.f32 %v490, %v505
        %v516 = vadd.f32 %v491, %v506
        %v517 = vadd.f32 %v492, %v507
        %v518 = vadd.f32 %v493, %v508
        %v519 = vadd.f32 %v494, %v509
        %v520 = vadd.f32 %v495, %v510
        %v521 = vadd.f32 %v496, %v511
        %v522 = vadd.f32 %v497, %v512
        %v523 = vadd.f32 %v498, %v513
        %v524 = vrot.slane %v434, 7
        %v525 = vrot.slane %v435, 7
        %v526 = vrot.slane %v436, 7
        %v527 = vrot.slane %v437, 7
        %v528 = vrot.slane %v438, 7
        %v529 = vrot.slane %v439, 7
        %v530 = vrot.slane %v440, 7
        %v531 = vrot.slane %v441, 7
        %v532 = vrot.slane %v442, 7
        %v533 = vrot.slane %v443, 7
        %v534 = vlaneseq
        %v535 = vshrl.u32 %v534, 7
        %vm536 = vcmp.lt.s32.totalorder %v535, 1
        %v537 = vsel %vm536, %v532, %v533
        %v538 = vsel %vm536, %v531, %v532
        %v539 = vsel %vm536, %v530, %v531
        %v540 = vsel %vm536, %v529, %v530
        %v541 = vsel %vm536, %v528, %v529
        %v542 = vsel %vm536, %v527, %v528
        %v543 = vsel %vm536, %v526, %v527
        %v544 = vsel %vm536, %v525, %v526
        %v545 = vsel %vm536, %v524, %v525
        %v546 = vsel %vm536, %v533, %v524
        %v547 = vadd.f32 %v546, %v474
        %v548 = vadd.f32 %v545, %v475
        %v549 = vadd.f32 %v544, %v476
        %v550 = vadd.f32 %v543, %v477
        %v551 = vadd.f32 %v542, %v478
        %v552 = vadd.f32 %v541, %v479
        %v553 = vadd.f32 %v540, %v480
        %v554 = vadd.f32 %v539, %v481
        %v555 = vadd.f32 %v538, %v482
        %v556 = vadd.f32 %v537, %v483
        %v557 = vrot.slane %v514, 1
        %v558 = vrot.slane %v515, 1
        %v559 = vrot.slane %v516, 1
        %v560 = vrot.slane %v517, 1
        %v561 = vrot.slane %v518, 1
        %v562 = vrot.slane %v519, 1
        %v563 = vrot.slane %v520, 1
        %v564 = vrot.slane %v521, 1
        %v565 = vrot.slane %v522, 1
        %v566 = vrot.slane %v523, 1
        %vm567 = vcmp.lt.s32.totalorder %v535, 7
        %v568 = vsel %vm567, %v565, %v566
        %v569 = vsel %vm567, %v564, %v565
        %v570 = vsel %vm567, %v563, %v564
        %v571 = vsel %vm567, %v562, %v563
        %v572 = vsel %vm567, %v561, %v562
        %v573 = vsel %vm567, %v560, %v561
        %v574 = vsel %vm567, %v559, %v560
        %v575 = vsel %vm567, %v558, %v559
        %v576 = vsel %vm567, %v557, %v558
        %v577 = vsel %vm567, %v566, %v557
        %v578 = vadd.f32 %v547, %v576
        %v579 = vadd.f32 %v548, %v575
        %v580 = vadd.f32 %v549, %v574
        %v581 = vadd.f32 %v550, %v573
        %v582 = vadd.f32 %v551, %v572
        %v583 = vadd.f32 %v552, %v571
        %v584 = vadd.f32 %v553, %v570
        %v585 = vadd.f32 %v554, %v569
        %v586 = vadd.f32 %v555, %v568
        %v587 = vadd.f32 %v556, %v577
        %v588 = vld [vmem:[%s2] sm:$0xff]
        %v589 = vld [vmem:[%s2 + $0x8] sm:$0xff]
        %v590 = vld [vmem:[%s2 + $0x10] sm:$0xff]
        %v591 = vld [vmem:[%s2 + $0x18] sm:$0xff]
        %v592 = vld [vmem:[%s2 + $0x20] sm:$0xff]
        %v593 = vld [vmem:[%s2 + $0x28] sm:$0xff]
        %v594 = vld [vmem:[%s2 + $0x30] sm:$0xff]
        %v595 = vld [vmem:[%s2 + $0x38] sm:$0xff]
        %v596 = vld [vmem:[%s2 + $0x40] sm:$0xff]
        %v597 = vld [vmem:[%s2 + $0x48] sm:$0xff]
        %v598 = vadd.f32 %v578, %v588
        %v599 = vadd.f32 %v579, %v589
        %v600 = vadd.f32 %v580, %v590
        %v601 = vadd.f32 %v581, %v591
        %v602 = vadd.f32 %v582, %v592
        %v603 = vadd.f32 %v583, %v593
        %v604 = vadd.f32 %v584, %v594
        %v605 = vadd.f32 %v585, %v595
        %v606 = vadd.f32 %v586, %v596
        %v607 = vadd.f32 %v587, %v597
        %v608 = vmax.f32 %v598, 0.0
        %v609 = vmax.f32 %v599, 0.0
        %v610 = vmax.f32 %v600, 0.0
        %v611 = vmax.f32 %v601, 0.0
        %v612 = vmax.f32 %v602, 0.0
        %v613 = vmax.f32 %v603, 0.0
        %v614 = vmax.f32 %v604, 0.0
        %v615 = vmax.f32 %v605, 0.0
        %v616 = vmax.f32 %v606, 0.0
        %v617 = vmax.f32 %v607, 0.0
        %v618 = vrot.slane %v608, 7
        %v619 = vrot.slane %v609, 7
        %v620 = vrot.slane %v610, 7
        %v621 = vrot.slane %v611, 7
        %v622 = vrot.slane %v612, 7
        %v623 = vrot.slane %v613, 7
        %v624 = vrot.slane %v614, 7
        %v625 = vrot.slane %v615, 7
        %v626 = vrot.slane %v616, 7
        %v627 = vrot.slane %v617, 7
        %v628 = vsel %vm536, %v626, %v627
        %v629 = vsel %vm536, %v625, %v626
        %v630 = vsel %vm536, %v624, %v625
        %v631 = vsel %vm536, %v623, %v624
        %v632 = vsel %vm536, %v622, %v623
        %v633 = vsel %vm536, %v621, %v622
        %v634 = vsel %vm536, %v620, %v621
        %v635 = vsel %vm536, %v619, %v620
        %v636 = vsel %vm536, %v618, %v619
        %v637 = vsel %vm536, %v627, %v618
        %v638 = vrot.slane %v608, 1
        %v639 = vrot.slane %v609, 1
        %v640 = vrot.slane %v610, 1
        %v641 = vrot.slane %v611, 1
        %v642 = vrot.slane %v612, 1
        %v643 = vrot.slane %v613, 1
        %v644 = vrot.slane %v614, 1
        %v645 = vrot.slane %v615, 1
        %v646 = vrot.slane %v616, 1
        %v647 = vrot.slane %v617, 1
        %v648 = vsel %vm567, %v646, %v647
        %v649 = vsel %vm567, %v645, %v646
        %v650 = vsel %vm567, %v644, %v645
        %v651 = vsel %vm567, %v643, %v644
        %v652 = vsel %vm567, %v642, %v643
        %v653 = vsel %vm567, %v641, %v642
        %v654 = vsel %vm567, %v640, %v641
        %v655 = vsel %vm567, %v639, %v640
        %v656 = vsel %vm567, %v638, %v639
        %v657 = vsel %vm567, %v647, %v638
        %v658 = vld [vmem:[%s3] sm:$0xff]
        %v659 = vld [vmem:[%s3 + $0x8] sm:$0xff]
        %v660 = vld [vmem:[%s3 + $0x10] sm:$0xff]
        %v661 = vld [vmem:[%s3 + $0x18] sm:$0xff]
        %v662 = vld [vmem:[%s3 + $0x20] sm:$0xff]
        %v663 = vld [vmem:[%s3 + $0x28] sm:$0xff]
        %v664 = vld [vmem:[%s3 + $0x30] sm:$0xff]
        %v665 = vld [vmem:[%s3 + $0x38] sm:$0xff]
        %v666 = vld [vmem:[%s3 + $0x40] sm:$0xff]
        %v667 = vld [vmem:[%s3 + $0x48] sm:$0xff]
        %v668 = vld [vmem:[%s3 + $0x50] sm:$0xff]
        %v669 = vld [vmem:[%s3 + $0x58] sm:$0xff]
        %v670 = vld [vmem:[%s3 + $0x60] sm:$0xff]
        %v671 = vld [vmem:[%s3 + $0x68] sm:$0xff]
        %v672 = vld [vmem:[%s3 + $0x70] sm:$0xff]
        %v673 = vld [vmem:[%s3 + $0x78] sm:$0xff]
        %s674 = scalar_lea.vmem %s3, 128
        %v675 = vld [vmem:[%s674] sm:$0xff]
        %v676 = vld [vmem:[%s674 + $0x8] sm:$0xff]
        %v677 = vld [vmem:[%s674 + $0x10] sm:$0xff]
        %v678 = vld [vmem:[%s674 + $0x18] sm:$0xff]
        %v679 = vld [vmem:[%s674 + $0x20] sm:$0xff]
        %v680 = vld [vmem:[%s674 + $0x28] sm:$0xff]
        %v681 = vld [vmem:[%s674 + $0x30] sm:$0xff]
        %v682 = vld [vmem:[%s674 + $0x38] sm:$0xff]
        %v683 = vld [vmem:[%s674 + $0x40] sm:$0xff]
        %v684 = vld [vmem:[%s674 + $0x48] sm:$0xff]
        %v685 = vld [vmem:[%s674 + $0x50] sm:$0xff]
        %v686 = vld [vmem:[%s674 + $0x58] sm:$0xff]
        %v687 = vld [vmem:[%s674 + $0x60] sm:$0xff]
        %v688 = vld [vmem:[%s674 + $0x68] sm:$0xff]
        %v689 = vld [vmem:[%s674 + $0x70] sm:$0xff]
        %v690 = vld [vmem:[%s674 + $0x78] sm:$0xff]
        %vm691 = vcmask 523264
        %v693 = vsel %vm691, %v608, 0
        %v696 = vsel %vm691, %v609, 0
        %v699 = vsel %vm691, %v610, 0
        %v702 = vsel %vm691, %v611, 0
        %v705 = vsel %vm691, %v612, 0
        %v708 = vsel %vm691, %v613, 0
        %v711 = vsel %vm691, %v614, 0
        %v714 = vsel %vm691, %v615, 0
        %v717 = vsel %vm691, %v616, 0
        %v720 = vsel %vm691, %v617, 0
        %722 = vmatprep.subr.mxu0 0.0
        %723 = vmatpush1.msra.mxu0 0.0
        %724 = vmatprep.subr.mxu0 0.0
        %725 = vmatpush1.msra.mxu0 0.0
        %726 = vmatprep.subr.mxu0 0.0
        %727 = vmatpush1.msra.mxu0 0.0
        %728 = vmatprep.subr.mxu0 0.0
        %729 = vmatpush1.msra.mxu0 0.0
        %730 = vmatprep.subr.mxu0 0.0
        %731 = vmatpush1.msra.mxu0 0.0
        %732 = vmatprep.subr.mxu0 0.0
        %733 = vmatpush1.msra.mxu0 0.0
        %734 = vmatprep.subr.mxu0 0.0
        %735 = vmatpush1.msra.mxu0 0.0
        %736 = vmatprep.subr.mxu0 0.0
        %737 = vmatpush1.msra.mxu0 0.0
        %738 = vmatprep.subr.mxu0 %v690
        %739 = vmatpush1.msra.mxu0 %v689
        %740 = vmatprep.subr.mxu0 %v688
        %741 = vmatpush1.msra.mxu0 %v687
        %742 = vmatprep.subr.mxu0 %v686
        %743 = vmatpush1.msra.mxu0 %v685
        %744 = vmatprep.subr.mxu0 %v684
        %745 = vmatpush1.msra.mxu0 %v683
        %746 = vmatprep.subr.mxu0 %v682
        %747 = vmatpush1.msra.mxu0 %v681
        %748 = vmatprep.subr.mxu0 %v680
        %749 = vmatpush1.msra.mxu0 %v679
        %750 = vmatprep.subr.mxu0 %v678
        %751 = vmatpush1.msra.mxu0 %v677
        %752 = vmatprep.subr.mxu0 %v676
        %753 = vmatpush1.msra.mxu0 %v675
        %754 = vmatprep.subr.mxu0 0.0
        %755 = vmatpush2.msra.mxu0 0.0
        %756 = vmatprep.subr.mxu0 0.0
        %757 = vmatpush2.msra.mxu0 0.0
        %758 = vmatprep.subr.mxu0 0.0
        %759 = vmatpush2.msra.mxu0 0.0
        %760 = vmatprep.subr.mxu0 0.0
        %761 = vmatpush2.msra.mxu0 0.0
        %762 = vmatprep.subr.mxu0 0.0
        %763 = vmatpush2.msra.mxu0 0.0
        %764 = vmatprep.subr.mxu0 0.0
        %765 = vmatpush2.msra.mxu0 0.0
        %766 = vmatprep.subr.mxu0 0.0
        %767 = vmatpush2.msra.mxu0 0.0
        %768 = vmatprep.subr.mxu0 0.0
        %769 = vmatpush2.msra.mxu0 0.0
        %770 = vmatprep.subr.mxu0 0.0
        %771 = vmatpush2.msra.mxu0 0.0
        %772 = vmatprep.subr.mxu0 0.0
        %773 = vmatpush2.msra.mxu0 0.0
        %774 = vmatprep.subr.mxu0 0.0
        %775 = vmatpush2.msra.mxu0 0.0
        %776 = vmatprep.subr.mxu0 0.0
        %777 = vmatpush2.msra.mxu0 0.0
        %778 = vmatprep.subr.mxu0 0.0
        %779 = vmatpush2.msra.mxu0 0.0
        %780 = vmatprep.subr.mxu0 0.0
        %781 = vmatpush2.msra.mxu0 0.0
        %782 = vmatprep.subr.mxu0 0.0
        %783 = vmatpush2.msra.mxu0 0.0
        %784 = vmatprep.subr.mxu0 0.0
        %785 = vmatpush2.msra.mxu0 0.0
        %786 = vmatprep.mubr.f32.mxu0 0.0
        %787 = vmatmul.mubr.f32.gmra.mxu0 %v693
        %v788 = vpop.f32.mrf.mxu0
        %v789 = vadd.f32 0.0, %v788
        %v790 = vpop.f32.mrf.mxu0
        %v791 = vadd.f32 0.0, %v790
        %792 = vmatprep.mubr.f32.mxu0 0.0
        %793 = vmatmul.mubr.f32.gmra.mxu0 %v696
        %v794 = vpop.f32.mrf.mxu0
        %v795 = vadd.f32 0.0, %v794
        %v796 = vpop.f32.mrf.mxu0
        %v797 = vadd.f32 0.0, %v796
        %798 = vmatprep.mubr.f32.mxu0 0.0
        %799 = vmatmul.mubr.f32.gmra.mxu0 %v699
        %v800 = vpop.f32.mrf.mxu0
        %v801 = vadd.f32 0.0, %v800
        %v802 = vpop.f32.mrf.mxu0
        %v803 = vadd.f32 0.0, %v802
        %804 = vmatprep.mubr.f32.mxu0 0.0
        %805 = vmatmul.mubr.f32.gmra.mxu0 %v702
        %v806 = vpop.f32.mrf.mxu0
        %v807 = vadd.f32 0.0, %v806
        %v808 = vpop.f32.mrf.mxu0
        %v809 = vadd.f32 0.0, %v808
        %810 = vmatprep.mubr.f32.mxu0 0.0
        %811 = vmatmul.mubr.f32.gmra.mxu0 %v705
        %v812 = vpop.f32.mrf.mxu0
        %v813 = vadd.f32 0.0, %v812
        %v814 = vpop.f32.mrf.mxu0
        %v815 = vadd.f32 0.0, %v814
        %816 = vmatprep.mubr.f32.mxu0 0.0
        %817 = vmatmul.mubr.f32.gmra.mxu0 %v708
        %v818 = vpop.f32.mrf.mxu0
        %v819 = vadd.f32 0.0, %v818
        %v820 = vpop.f32.mrf.mxu0
        %v821 = vadd.f32 0.0, %v820
        %822 = vmatprep.mubr.f32.mxu0 0.0
        %823 = vmatmul.mubr.f32.gmra.mxu0 %v711
        %v824 = vpop.f32.mrf.mxu0
        %v825 = vadd.f32 0.0, %v824
        %v826 = vpop.f32.mrf.mxu0
        %v827 = vadd.f32 0.0, %v826
        %828 = vmatprep.mubr.f32.mxu0 0.0
        %829 = vmatmul.mubr.f32.gmra.mxu0 %v714
        %v830 = vpop.f32.mrf.mxu0
        %v831 = vadd.f32 0.0, %v830
        %v832 = vpop.f32.mrf.mxu0
        %v833 = vadd.f32 0.0, %v832
        %834 = vmatprep.mubr.f32.mxu0 0.0
        %835 = vmatmul.mubr.f32.gmra.mxu0 %v717
        %v836 = vpop.f32.mrf.mxu0
        %v837 = vadd.f32 0.0, %v836
        %v838 = vpop.f32.mrf.mxu0
        %v839 = vadd.f32 0.0, %v838
        %840 = vmatprep.mubr.f32.mxu0 0.0
        %841 = vmatmul.mubr.f32.gmra.mxu0 %v720
        %v842 = vpop.f32.mrf.mxu0
        %v843 = vadd.f32 0.0, %v842
        %v844 = vpop.f32.mrf.mxu0
        %v845 = vadd.f32 0.0, %v844
        %846 = vdwg.mxu0
        %v848 = vsel %vm691, %v637, 0
        %v851 = vsel %vm691, %v636, 0
        %v854 = vsel %vm691, %v635, 0
        %v857 = vsel %vm691, %v634, 0
        %v860 = vsel %vm691, %v633, 0
        %v863 = vsel %vm691, %v632, 0
        %v866 = vsel %vm691, %v631, 0
        %v869 = vsel %vm691, %v630, 0
        %v872 = vsel %vm691, %v629, 0
        %v875 = vsel %vm691, %v628, 0
        %877 = vmatprep.subr.mxu0 0.0
        %878 = vmatpush1.msra.mxu0 0.0
        %879 = vmatprep.subr.mxu0 0.0
        %880 = vmatpush1.msra.mxu0 0.0
        %881 = vmatprep.subr.mxu0 0.0
        %882 = vmatpush1.msra.mxu0 0.0
        %883 = vmatprep.subr.mxu0 0.0
        %884 = vmatpush1.msra.mxu0 0.0
        %885 = vmatprep.subr.mxu0 0.0
        %886 = vmatpush1.msra.mxu0 0.0
        %887 = vmatprep.subr.mxu0 0.0
        %888 = vmatpush1.msra.mxu0 0.0
        %889 = vmatprep.subr.mxu0 0.0
        %890 = vmatpush1.msra.mxu0 0.0
        %891 = vmatprep.subr.mxu0 0.0
        %892 = vmatpush1.msra.mxu0 0.0
        %893 = vmatprep.subr.mxu0 %v673
        %894 = vmatpush1.msra.mxu0 %v672
        %895 = vmatprep.subr.mxu0 %v671
        %896 = vmatpush1.msra.mxu0 %v670
        %897 = vmatprep.subr.mxu0 %v669
        %898 = vmatpush1.msra.mxu0 %v668
        %899 = vmatprep.subr.mxu0 %v667
        %900 = vmatpush1.msra.mxu0 %v666
        %901 = vmatprep.subr.mxu0 %v665
        %902 = vmatpush1.msra.mxu0 %v664
        %903 = vmatprep.subr.mxu0 %v663
        %904 = vmatpush1.msra.mxu0 %v662
        %905 = vmatprep.subr.mxu0 %v661
        %906 = vmatpush1.msra.mxu0 %v660
        %907 = vmatprep.subr.mxu0 %v659
        %908 = vmatpush1.msra.mxu0 %v658
        %909 = vmatprep.subr.mxu0 0.0
        %910 = vmatpush2.msra.mxu0 0.0
        %911 = vmatprep.subr.mxu0 0.0
        %912 = vmatpush2.msra.mxu0 0.0
        %913 = vmatprep.subr.mxu0 0.0
        %914 = vmatpush2.msra.mxu0 0.0
        %915 = vmatprep.subr.mxu0 0.0
        %916 = vmatpush2.msra.mxu0 0.0
        %917 = vmatprep.subr.mxu0 0.0
        %918 = vmatpush2.msra.mxu0 0.0
        %919 = vmatprep.subr.mxu0 0.0
        %920 = vmatpush2.msra.mxu0 0.0
        %921 = vmatprep.subr.mxu0 0.0
        %922 = vmatpush2.msra.mxu0 0.0
        %923 = vmatprep.subr.mxu0 0.0
        %924 = vmatpush2.msra.mxu0 0.0
        %925 = vmatprep.subr.mxu0 0.0
        %926 = vmatpush2.msra.mxu0 0.0
        %927 = vmatprep.subr.mxu0 0.0
        %928 = vmatpush2.msra.mxu0 0.0
        %929 = vmatprep.subr.mxu0 0.0
        %930 = vmatpush2.msra.mxu0 0.0
        %931 = vmatprep.subr.mxu0 0.0
        %932 = vmatpush2.msra.mxu0 0.0
        %933 = vmatprep.subr.mxu0 0.0
        %934 = vmatpush2.msra.mxu0 0.0
        %935 = vmatprep.subr.mxu0 0.0
        %936 = vmatpush2.msra.mxu0 0.0
        %937 = vmatprep.subr.mxu0 0.0
        %938 = vmatpush2.msra.mxu0 0.0
        %939 = vmatprep.subr.mxu0 0.0
        %940 = vmatpush2.msra.mxu0 0.0
        %941 = vmatprep.mubr.f32.mxu0 0.0
        %942 = vmatmul.mubr.f32.gmra.mxu0 %v848
        %v943 = vpop.f32.mrf.mxu0
        %v944 = vadd.f32 %v789, %v943
        %v945 = vpop.f32.mrf.mxu0
        %v946 = vadd.f32 %v791, %v945
        %947 = vmatprep.mubr.f32.mxu0 0.0
        %948 = vmatmul.mubr.f32.gmra.mxu0 %v851
        %v949 = vpop.f32.mrf.mxu0
        %v950 = vadd.f32 %v795, %v949
        %v951 = vpop.f32.mrf.mxu0
        %v952 = vadd.f32 %v797, %v951
        %953 = vmatprep.mubr.f32.mxu0 0.0
        %954 = vmatmul.mubr.f32.gmra.mxu0 %v854
        %v955 = vpop.f32.mrf.mxu0
        %v956 = vadd.f32 %v801, %v955
        %v957 = vpop.f32.mrf.mxu0
        %v958 = vadd.f32 %v803, %v957
        %959 = vmatprep.mubr.f32.mxu0 0.0
        %960 = vmatmul.mubr.f32.gmra.mxu0 %v857
        %v961 = vpop.f32.mrf.mxu0
        %v962 = vadd.f32 %v807, %v961
        %v963 = vpop.f32.mrf.mxu0
        %v964 = vadd.f32 %v809, %v963
        %965 = vmatprep.mubr.f32.mxu0 0.0
        %966 = vmatmul.mubr.f32.gmra.mxu0 %v860
        %v967 = vpop.f32.mrf.mxu0
        %v968 = vadd.f32 %v813, %v967
        %v969 = vpop.f32.mrf.mxu0
        %v970 = vadd.f32 %v815, %v969
        %971 = vmatprep.mubr.f32.mxu0 0.0
        %972 = vmatmul.mubr.f32.gmra.mxu0 %v863
        %v973 = vpop.f32.mrf.mxu0
        %v974 = vadd.f32 %v819, %v973
        %v975 = vpop.f32.mrf.mxu0
        %v976 = vadd.f32 %v821, %v975
        %977 = vmatprep.mubr.f32.mxu0 0.0
        %978 = vmatmul.mubr.f32.gmra.mxu0 %v866
        %v979 = vpop.f32.mrf.mxu0
        %v980 = vadd.f32 %v825, %v979
        %v981 = vpop.f32.mrf.mxu0
        %v982 = vadd.f32 %v827, %v981
        %983 = vmatprep.mubr.f32.mxu0 0.0
        %984 = vmatmul.mubr.f32.gmra.mxu0 %v869
        %v985 = vpop.f32.mrf.mxu0
        %v986 = vadd.f32 %v831, %v985
        %v987 = vpop.f32.mrf.mxu0
        %v988 = vadd.f32 %v833, %v987
        %989 = vmatprep.mubr.f32.mxu0 0.0
        %990 = vmatmul.mubr.f32.gmra.mxu0 %v872
        %v991 = vpop.f32.mrf.mxu0
        %v992 = vadd.f32 %v837, %v991
        %v993 = vpop.f32.mrf.mxu0
        %v994 = vadd.f32 %v839, %v993
        %995 = vmatprep.mubr.f32.mxu0 0.0
        %996 = vmatmul.mubr.f32.gmra.mxu0 %v875
        %v997 = vpop.f32.mrf.mxu0
        %v998 = vadd.f32 %v843, %v997
        %v999 = vpop.f32.mrf.mxu0
        %v1000 = vadd.f32 %v845, %v999
        %1001 = vdwg.mxu0
        %s1002 = scalar_lea.vmem %s3, 256
        %v1003 = vld [vmem:[%s1002] sm:$0xff]
        %v1004 = vld [vmem:[%s1002 + $0x8] sm:$0xff]
        %v1005 = vld [vmem:[%s1002 + $0x10] sm:$0xff]
        %v1006 = vld [vmem:[%s1002 + $0x18] sm:$0xff]
        %v1007 = vld [vmem:[%s1002 + $0x20] sm:$0xff]
        %v1008 = vld [vmem:[%s1002 + $0x28] sm:$0xff]
        %v1009 = vld [vmem:[%s1002 + $0x30] sm:$0xff]
        %v1010 = vld [vmem:[%s1002 + $0x38] sm:$0xff]
        %v1011 = vld [vmem:[%s1002 + $0x40] sm:$0xff]
        %v1012 = vld [vmem:[%s1002 + $0x48] sm:$0xff]
        %v1013 = vld [vmem:[%s1002 + $0x50] sm:$0xff]
        %v1014 = vld [vmem:[%s1002 + $0x58] sm:$0xff]
        %v1015 = vld [vmem:[%s1002 + $0x60] sm:$0xff]
        %v1016 = vld [vmem:[%s1002 + $0x68] sm:$0xff]
        %v1017 = vld [vmem:[%s1002 + $0x70] sm:$0xff]
        %v1018 = vld [vmem:[%s1002 + $0x78] sm:$0xff]
        %v1020 = vsel %vm691, %v656, 0
        %v1023 = vsel %vm691, %v655, 0
        %v1026 = vsel %vm691, %v654, 0
        %v1029 = vsel %vm691, %v653, 0
        %v1032 = vsel %vm691, %v652, 0
        %v1035 = vsel %vm691, %v651, 0
        %v1038 = vsel %vm691, %v650, 0
        %v1041 = vsel %vm691, %v649, 0
        %v1044 = vsel %vm691, %v648, 0
        %v1047 = vsel %vm691, %v657, 0
        %1049 = vmatprep.subr.mxu0 0.0
        %1050 = vmatpush1.msra.mxu0 0.0
        %1051 = vmatprep.subr.mxu0 0.0
        %1052 = vmatpush1.msra.mxu0 0.0
        %1053 = vmatprep.subr.mxu0 0.0
        %1054 = vmatpush1.msra.mxu0 0.0
        %1055 = vmatprep.subr.mxu0 0.0
        %1056 = vmatpush1.msra.mxu0 0.0
        %1057 = vmatprep.subr.mxu0 0.0
        %1058 = vmatpush1.msra.mxu0 0.0
        %1059 = vmatprep.subr.mxu0 0.0
        %1060 = vmatpush1.msra.mxu0 0.0
        %1061 = vmatprep.subr.mxu0 0.0
        %1062 = vmatpush1.msra.mxu0 0.0
        %1063 = vmatprep.subr.mxu0 0.0
        %1064 = vmatpush1.msra.mxu0 0.0
        %1065 = vmatprep.subr.mxu0 %v1018
        %1066 = vmatpush1.msra.mxu0 %v1017
        %1067 = vmatprep.subr.mxu0 %v1016
        %1068 = vmatpush1.msra.mxu0 %v1015
        %1069 = vmatprep.subr.mxu0 %v1014
        %1070 = vmatpush1.msra.mxu0 %v1013
        %1071 = vmatprep.subr.mxu0 %v1012
        %1072 = vmatpush1.msra.mxu0 %v1011
        %1073 = vmatprep.subr.mxu0 %v1010
        %1074 = vmatpush1.msra.mxu0 %v1009
        %1075 = vmatprep.subr.mxu0 %v1008
        %1076 = vmatpush1.msra.mxu0 %v1007
        %1077 = vmatprep.subr.mxu0 %v1006
        %1078 = vmatpush1.msra.mxu0 %v1005
        %1079 = vmatprep.subr.mxu0 %v1004
        %1080 = vmatpush1.msra.mxu0 %v1003
        %1081 = vmatprep.subr.mxu0 0.0
        %1082 = vmatpush2.msra.mxu0 0.0
        %1083 = vmatprep.subr.mxu0 0.0
        %1084 = vmatpush2.msra.mxu0 0.0
        %1085 = vmatprep.subr.mxu0 0.0
        %1086 = vmatpush2.msra.mxu0 0.0
        %1087 = vmatprep.subr.mxu0 0.0
        %1088 = vmatpush2.msra.mxu0 0.0
        %1089 = vmatprep.subr.mxu0 0.0
        %1090 = vmatpush2.msra.mxu0 0.0
        %1091 = vmatprep.subr.mxu0 0.0
        %1092 = vmatpush2.msra.mxu0 0.0
        %1093 = vmatprep.subr.mxu0 0.0
        %1094 = vmatpush2.msra.mxu0 0.0
        %1095 = vmatprep.subr.mxu0 0.0
        %1096 = vmatpush2.msra.mxu0 0.0
        %1097 = vmatprep.subr.mxu0 0.0
        %1098 = vmatpush2.msra.mxu0 0.0
        %1099 = vmatprep.subr.mxu0 0.0
        %1100 = vmatpush2.msra.mxu0 0.0
        %1101 = vmatprep.subr.mxu0 0.0
        %1102 = vmatpush2.msra.mxu0 0.0
        %1103 = vmatprep.subr.mxu0 0.0
        %1104 = vmatpush2.msra.mxu0 0.0
        %1105 = vmatprep.subr.mxu0 0.0
        %1106 = vmatpush2.msra.mxu0 0.0
        %1107 = vmatprep.subr.mxu0 0.0
        %1108 = vmatpush2.msra.mxu0 0.0
        %1109 = vmatprep.subr.mxu0 0.0
        %1110 = vmatpush2.msra.mxu0 0.0
        %1111 = vmatprep.subr.mxu0 0.0
        %1112 = vmatpush2.msra.mxu0 0.0
        %1113 = vmatprep.mubr.f32.mxu0 0.0
        %1114 = vmatmul.mubr.f32.gmra.mxu0 %v1020
        %v1115 = vpop.f32.mrf.mxu0
        %v1116 = vadd.f32 0.0, %v1115
        %v1117 = vpop.f32.mrf.mxu0
        %v1118 = vadd.f32 0.0, %v1117
        %1119 = vmatprep.mubr.f32.mxu0 0.0
        %1120 = vmatmul.mubr.f32.gmra.mxu0 %v1023
        %v1121 = vpop.f32.mrf.mxu0
        %v1122 = vadd.f32 0.0, %v1121
        %v1123 = vpop.f32.mrf.mxu0
        %v1124 = vadd.f32 0.0, %v1123
        %1125 = vmatprep.mubr.f32.mxu0 0.0
        %1126 = vmatmul.mubr.f32.gmra.mxu0 %v1026
        %v1127 = vpop.f32.mrf.mxu0
        %v1128 = vadd.f32 0.0, %v1127
        %v1129 = vpop.f32.mrf.mxu0
        %v1130 = vadd.f32 0.0, %v1129
        %1131 = vmatprep.mubr.f32.mxu0 0.0
        %1132 = vmatmul.mubr.f32.gmra.mxu0 %v1029
        %v1133 = vpop.f32.mrf.mxu0
        %v1134 = vadd.f32 0.0, %v1133
        %v1135 = vpop.f32.mrf.mxu0
        %v1136 = vadd.f32 0.0, %v1135
        %1137 = vmatprep.mubr.f32.mxu0 0.0
        %1138 = vmatmul.mubr.f32.gmra.mxu0 %v1032
        %v1139 = vpop.f32.mrf.mxu0
        %v1140 = vadd.f32 0.0, %v1139
        %v1141 = vpop.f32.mrf.mxu0
        %v1142 = vadd.f32 0.0, %v1141
        %1143 = vmatprep.mubr.f32.mxu0 0.0
        %1144 = vmatmul.mubr.f32.gmra.mxu0 %v1035
        %v1145 = vpop.f32.mrf.mxu0
        %v1146 = vadd.f32 0.0, %v1145
        %v1147 = vpop.f32.mrf.mxu0
        %v1148 = vadd.f32 0.0, %v1147
        %1149 = vmatprep.mubr.f32.mxu0 0.0
        %1150 = vmatmul.mubr.f32.gmra.mxu0 %v1038
        %v1151 = vpop.f32.mrf.mxu0
        %v1152 = vadd.f32 0.0, %v1151
        %v1153 = vpop.f32.mrf.mxu0
        %v1154 = vadd.f32 0.0, %v1153
        %1155 = vmatprep.mubr.f32.mxu0 0.0
        %1156 = vmatmul.mubr.f32.gmra.mxu0 %v1041
        %v1157 = vpop.f32.mrf.mxu0
        %v1158 = vadd.f32 0.0, %v1157
        %v1159 = vpop.f32.mrf.mxu0
        %v1160 = vadd.f32 0.0, %v1159
        %1161 = vmatprep.mubr.f32.mxu0 0.0
        %1162 = vmatmul.mubr.f32.gmra.mxu0 %v1044
        %v1163 = vpop.f32.mrf.mxu0
        %v1164 = vadd.f32 0.0, %v1163
        %v1165 = vpop.f32.mrf.mxu0
        %v1166 = vadd.f32 0.0, %v1165
        %1167 = vmatprep.mubr.f32.mxu0 0.0
        %1168 = vmatmul.mubr.f32.gmra.mxu0 %v1047
        %v1169 = vpop.f32.mrf.mxu0
        %v1170 = vadd.f32 0.0, %v1169
        %v1171 = vpop.f32.mrf.mxu0
        %v1172 = vadd.f32 0.0, %v1171
        %1173 = vdwg.mxu0
        %v1174 = vadd.f32 %v944, %v1116
        %v1175 = vadd.f32 %v946, %v1118
        %v1176 = vadd.f32 %v950, %v1122
        %v1177 = vadd.f32 %v952, %v1124
        %v1178 = vadd.f32 %v956, %v1128
        %v1179 = vadd.f32 %v958, %v1130
        %v1180 = vadd.f32 %v962, %v1134
        %v1181 = vadd.f32 %v964, %v1136
        %v1182 = vadd.f32 %v968, %v1140
        %v1183 = vadd.f32 %v970, %v1142
        %v1184 = vadd.f32 %v974, %v1146
        %v1185 = vadd.f32 %v976, %v1148
        %v1186 = vadd.f32 %v980, %v1152
        %v1187 = vadd.f32 %v982, %v1154
        %v1188 = vadd.f32 %v986, %v1158
        %v1189 = vadd.f32 %v988, %v1160
        %v1190 = vadd.f32 %v992, %v1164
        %v1191 = vadd.f32 %v994, %v1166
        %v1192 = vadd.f32 %v998, %v1170
        %v1193 = vadd.f32 %v1000, %v1172
        %v1194 = vld [vmem:[%s4] sm:$0xff]
        %v1195 = vld [vmem:[%s4 + $0x8] sm:$0xff]
        %v1196 = vld [vmem:[%s4 + $0x10] sm:$0xff]
        %v1197 = vld [vmem:[%s4 + $0x18] sm:$0xff]
        %v1198 = vld [vmem:[%s4 + $0x20] sm:$0xff]
        %v1199 = vld [vmem:[%s4 + $0x28] sm:$0xff]
        %v1200 = vld [vmem:[%s4 + $0x30] sm:$0xff]
        %v1201 = vld [vmem:[%s4 + $0x38] sm:$0xff]
        %v1202 = vld [vmem:[%s4 + $0x40] sm:$0xff]
        %v1203 = vld [vmem:[%s4 + $0x48] sm:$0xff]
        %v1204 = vld [vmem:[%s4 + $0x50] sm:$0xff]
        %v1205 = vld [vmem:[%s4 + $0x58] sm:$0xff]
        %v1206 = vld [vmem:[%s4 + $0x60] sm:$0xff]
        %v1207 = vld [vmem:[%s4 + $0x68] sm:$0xff]
        %v1208 = vld [vmem:[%s4 + $0x70] sm:$0xff]
        %v1209 = vld [vmem:[%s4 + $0x78] sm:$0xff]
        %v1210 = vld [vmem:[%s4 + $0x80] sm:$0xff]
        %v1211 = vld [vmem:[%s4 + $0x88] sm:$0xff]
        %v1212 = vld [vmem:[%s4 + $0x90] sm:$0xff]
        %v1213 = vld [vmem:[%s4 + $0x98] sm:$0xff]
        %v1214 = vadd.f32 %v1174, %v1194
        %v1215 = vadd.f32 %v1175, %v1195
        %v1216 = vadd.f32 %v1176, %v1196
        %v1217 = vadd.f32 %v1177, %v1197
        %v1218 = vadd.f32 %v1178, %v1198
        %v1219 = vadd.f32 %v1179, %v1199
        %v1220 = vadd.f32 %v1180, %v1200
        %v1221 = vadd.f32 %v1181, %v1201
        %v1222 = vadd.f32 %v1182, %v1202
        %v1223 = vadd.f32 %v1183, %v1203
        %v1224 = vadd.f32 %v1184, %v1204
        %v1225 = vadd.f32 %v1185, %v1205
        %v1226 = vadd.f32 %v1186, %v1206
        %v1227 = vadd.f32 %v1187, %v1207
        %v1228 = vadd.f32 %v1188, %v1208
        %v1229 = vadd.f32 %v1189, %v1209
        %v1230 = vadd.f32 %v1190, %v1210
        %v1231 = vadd.f32 %v1191, %v1211
        %v1232 = vadd.f32 %v1192, %v1212
        %v1233 = vadd.f32 %v1193, %v1213
        %v1234 = vmax.f32 %v1214, 0.0
        %v1235 = vmax.f32 %v1215, 0.0
        %v1236 = vmax.f32 %v1216, 0.0
        %v1237 = vmax.f32 %v1217, 0.0
        %v1238 = vmax.f32 %v1218, 0.0
        %v1239 = vmax.f32 %v1219, 0.0
        %v1240 = vmax.f32 %v1220, 0.0
        %v1241 = vmax.f32 %v1221, 0.0
        %v1242 = vmax.f32 %v1222, 0.0
        %v1243 = vmax.f32 %v1223, 0.0
        %v1244 = vmax.f32 %v1224, 0.0
        %v1245 = vmax.f32 %v1225, 0.0
        %v1246 = vmax.f32 %v1226, 0.0
        %v1247 = vmax.f32 %v1227, 0.0
        %v1248 = vmax.f32 %v1228, 0.0
        %v1249 = vmax.f32 %v1229, 0.0
        %v1250 = vmax.f32 %v1230, 0.0
        %v1251 = vmax.f32 %v1231, 0.0
        %v1252 = vmax.f32 %v1232, 0.0
        %v1253 = vmax.f32 %v1233, 0.0
        %v1254 = vld [vmem:[%s5] sm:$0x3]
        %vm1255 = vcmask 654336
        %v1257 = vsel %vm1255, %v1254, 0
        %1259 = vmatprep.subr.mxu0 0.0
        %1260 = vmatpush1.msra.mxu0 0.0
        %1261 = vmatprep.subr.mxu0 0.0
        %1262 = vmatpush1.msra.mxu0 0.0
        %1263 = vmatprep.subr.mxu0 0.0
        %1264 = vmatpush1.msra.mxu0 0.0
        %1265 = vmatprep.subr.mxu0 0.0
        %1266 = vmatpush1.msra.mxu0 0.0
        %1267 = vmatprep.subr.mxu0 0.0
        %1268 = vmatpush1.msra.mxu0 0.0
        %1269 = vmatprep.subr.mxu0 0.0
        %1270 = vmatpush1.msra.mxu0 0.0
        %1271 = vmatprep.subr.mxu0 %v1253
        %1272 = vmatpush1.msra.mxu0 %v1252
        %1273 = vmatprep.subr.mxu0 %v1251
        %1274 = vmatpush1.msra.mxu0 %v1250
        %1275 = vmatprep.subr.mxu0 %v1249
        %1276 = vmatpush1.msra.mxu0 %v1248
        %1277 = vmatprep.subr.mxu0 %v1247
        %1278 = vmatpush1.msra.mxu0 %v1246
        %1279 = vmatprep.subr.mxu0 %v1245
        %1280 = vmatpush1.msra.mxu0 %v1244
        %1281 = vmatprep.subr.mxu0 %v1243
        %1282 = vmatpush1.msra.mxu0 %v1242
        %1283 = vmatprep.subr.mxu0 %v1241
        %1284 = vmatpush1.msra.mxu0 %v1240
        %1285 = vmatprep.subr.mxu0 %v1239
        %1286 = vmatpush1.msra.mxu0 %v1238
        %1287 = vmatprep.subr.mxu0 %v1237
        %1288 = vmatpush1.msra.mxu0 %v1236
        %1289 = vmatprep.subr.mxu0 %v1235
        %1290 = vmatpush1.msra.mxu0 %v1234
        %1291 = vmatprep.subr.mxu0 0.0
        %1292 = vmatpush2.msra.mxu0 0.0
        %1293 = vmatprep.subr.mxu0 0.0
        %1294 = vmatpush2.msra.mxu0 0.0
        %1295 = vmatprep.subr.mxu0 0.0
        %1296 = vmatpush2.msra.mxu0 0.0
        %1297 = vmatprep.subr.mxu0 0.0
        %1298 = vmatpush2.msra.mxu0 0.0
        %1299 = vmatprep.subr.mxu0 0.0
        %1300 = vmatpush2.msra.mxu0 0.0
        %1301 = vmatprep.subr.mxu0 0.0
        %1302 = vmatpush2.msra.mxu0 0.0
        %1303 = vmatprep.subr.mxu0 0.0
        %1304 = vmatpush2.msra.mxu0 0.0
        %1305 = vmatprep.subr.mxu0 0.0
        %1306 = vmatpush2.msra.mxu0 0.0
        %1307 = vmatprep.subr.mxu0 0.0
        %1308 = vmatpush2.msra.mxu0 0.0
        %1309 = vmatprep.subr.mxu0 0.0
        %1310 = vmatpush2.msra.mxu0 0.0
        %1311 = vmatprep.subr.mxu0 0.0
        %1312 = vmatpush2.msra.mxu0 0.0
        %1313 = vmatprep.subr.mxu0 0.0
        %1314 = vmatpush2.msra.mxu0 0.0
        %1315 = vmatprep.subr.mxu0 0.0
        %1316 = vmatpush2.msra.mxu0 0.0
        %1317 = vmatprep.subr.mxu0 0.0
        %1318 = vmatpush2.msra.mxu0 0.0
        %1319 = vmatprep.subr.mxu0 0.0
        %1320 = vmatpush2.msra.mxu0 0.0
        %1321 = vmatprep.subr.mxu0 0.0
        %1322 = vmatpush2.msra.mxu0 0.0
        %1323 = vmatprep.mubr.f32.mxu0 0.0
        %1324 = vmatmul.mubr.f32.gmra.mxu0 %v1257
        %v1325 = vpop.f32.mrf.mxu0
        %v1326 = vadd.f32 0.0, %v1325
        %v1327 = vpop.f32.mrf.mxu0
        %v1328 = vadd.f32 0.0, %v1327
        %1329 = vdwg.mxu0
        %v1330 = vld [vmem:[%s6] sm:$0xff]
        %v1331 = vld [vmem:[%s6 + $0x8] sm:$0xff]
        %v1332 = vld [vmem:[%s6 + $0x10] sm:$0xff]
        %v1333 = vld [vmem:[%s6 + $0x18] sm:$0xff]
        %v1334 = vld [vmem:[%s6 + $0x20] sm:$0xff]
        %v1335 = vld [vmem:[%s6 + $0x28] sm:$0xff]
        %v1336 = vld [vmem:[%s6 + $0x30] sm:$0xff]
        %v1337 = vld [vmem:[%s6 + $0x38] sm:$0xff]
        %v1338 = vld [vmem:[%s6 + $0x40] sm:$0xff]
        %v1339 = vld [vmem:[%s6 + $0x48] sm:$0xff]
        %v1340 = vld [vmem:[%s6 + $0x50] sm:$0xff]
        %v1341 = vld [vmem:[%s6 + $0x58] sm:$0xff]
        %v1342 = vld [vmem:[%s6 + $0x60] sm:$0xff]
        %v1343 = vld [vmem:[%s6 + $0x68] sm:$0xff]
        %v1344 = vld [vmem:[%s6 + $0x70] sm:$0xff]
        %v1345 = vld [vmem:[%s6 + $0x78] sm:$0xff]
        %v1346 = vld [vmem:[%s6 + $0x80] sm:$0xff]
        %v1347 = vld [vmem:[%s6 + $0x88] sm:$0xff]
        %v1348 = vld [vmem:[%s6 + $0x90] sm:$0xff]
        %v1349 = vld [vmem:[%s6 + $0x98] sm:$0xff]
        %v1350 = vld [vmem:[%s6 + $0xa0] sm:$0xff]
        %v1351 = vld [vmem:[%s6 + $0xa8] sm:$0xff]
        %v1352 = vld [vmem:[%s6 + $0xb0] sm:$0xff]
        %v1353 = vld [vmem:[%s6 + $0xb8] sm:$0xff]
        %v1354 = vld [vmem:[%s6 + $0xc0] sm:$0xff]
        %v1355 = vld [vmem:[%s6 + $0xc8] sm:$0xff]
        %v1356 = vld [vmem:[%s6 + $0xd0] sm:$0xff]
        %v1357 = vld [vmem:[%s6 + $0xd8] sm:$0xff]
        %v1358 = vld [vmem:[%s6 + $0xe0] sm:$0xff]
        %v1359 = vld [vmem:[%s6 + $0xe8] sm:$0xff]
        %v1360 = vld [vmem:[%s6 + $0xf0] sm:$0xff]
        %v1361 = vld [vmem:[%s6 + $0xf8] sm:$0xff]
        %v1362 = vld [vmem:[%s7] sm:$0x1]
        %v1364 = vlaneseq
        %v1365 = vshrl.u32 %v1364, 7
        %v1366 = vsub.s32 0, %v1365
        %v1367 = vrot.slane %v1362, %v1366
        %1369 = vmatprep.subr.mxu0 0.0
        %1370 = vmatpush1.msra.mxu0 %v1345
        %1371 = vmatprep.subr.mxu0 0.0
        %1372 = vmatpush1.msra.mxu0 %v1344
        %1373 = vmatprep.subr.mxu0 0.0
        %1374 = vmatpush1.msra.mxu0 %v1343
        %1375 = vmatprep.subr.mxu0 0.0
        %1376 = vmatpush1.msra.mxu0 %v1342
        %1377 = vmatprep.subr.mxu0 0.0
        %1378 = vmatpush1.msra.mxu0 %v1341
        %1379 = vmatprep.subr.mxu0 0.0
        %1380 = vmatpush1.msra.mxu0 %v1340
        %1381 = vmatprep.subr.mxu0 0.0
        %1382 = vmatpush1.msra.mxu0 %v1339
        %1383 = vmatprep.subr.mxu0 0.0
        %1384 = vmatpush1.msra.mxu0 %v1338
        %1385 = vmatprep.subr.mxu0 0.0
        %1386 = vmatpush1.msra.mxu0 %v1337
        %1387 = vmatprep.subr.mxu0 0.0
        %1388 = vmatpush1.msra.mxu0 %v1336
        %1389 = vmatprep.subr.mxu0 0.0
        %1390 = vmatpush1.msra.mxu0 %v1335
        %1391 = vmatprep.subr.mxu0 0.0
        %1392 = vmatpush1.msra.mxu0 %v1334
        %1393 = vmatprep.subr.mxu0 0.0
        %1394 = vmatpush1.msra.mxu0 %v1333
        %1395 = vmatprep.subr.mxu0 0.0
        %1396 = vmatpush1.msra.mxu0 %v1332
        %1397 = vmatprep.subr.mxu0 0.0
        %1398 = vmatpush1.msra.mxu0 %v1331
        %1399 = vmatprep.subr.mxu0 0.0
        %1400 = vmatpush1.msra.mxu0 %v1330
        %1401 = vmatprep.subr.mxu0 0.0
        %1402 = vmatpush2.msra.mxu0 %v1361
        %1403 = vmatprep.subr.mxu0 0.0
        %1404 = vmatpush2.msra.mxu0 %v1360
        %1405 = vmatprep.subr.mxu0 0.0
        %1406 = vmatpush2.msra.mxu0 %v1359
        %1407 = vmatprep.subr.mxu0 0.0
        %1408 = vmatpush2.msra.mxu0 %v1358
        %1409 = vmatprep.subr.mxu0 0.0
        %1410 = vmatpush2.msra.mxu0 %v1357
        %1411 = vmatprep.subr.mxu0 0.0
        %1412 = vmatpush2.msra.mxu0 %v1356
        %1413 = vmatprep.subr.mxu0 0.0
        %1414 = vmatpush2.msra.mxu0 %v1355
        %1415 = vmatprep.subr.mxu0 0.0
        %1416 = vmatpush2.msra.mxu0 %v1354
        %1417 = vmatprep.subr.mxu0 0.0
        %1418 = vmatpush2.msra.mxu0 %v1353
        %1419 = vmatprep.subr.mxu0 0.0
        %1420 = vmatpush2.msra.mxu0 %v1352
        %1421 = vmatprep.subr.mxu0 0.0
        %1422 = vmatpush2.msra.mxu0 %v1351
        %1423 = vmatprep.subr.mxu0 0.0
        %1424 = vmatpush2.msra.mxu0 %v1350
        %1425 = vmatprep.subr.mxu0 0.0
        %1426 = vmatpush2.msra.mxu0 %v1349
        %1427 = vmatprep.subr.mxu0 0.0
        %1428 = vmatpush2.msra.mxu0 %v1348
        %1429 = vmatprep.subr.mxu0 0.0
        %1430 = vmatpush2.msra.mxu0 %v1347
        %1431 = vmatprep.subr.mxu0 0.0
        %1432 = vmatpush2.msra.mxu0 %v1346
        %1433 = vmatprep.mubr.f32.mxu0 %v1328
        %1434 = vmatmul.mubr.f32.gmra.mxu0 %v1326
        %v1435 = vpop.f32.mrf.mxu0
        %v1436 = vadd.f32 %v1367, %v1435
        %v1437 = vpop.f32.mrf.mxu0
        %1438 = vdwg.mxu0
        %1439 = vst [vmem:[%s298] sm:$0x3] %v1436
        %s1440 = sand.u32 %s203, 1
        %s1441 = scalar_lea.sflag [#allocation3], %s1440
        %s1442 = sand.u32 %s203, 1
        %s1443 = smul.addr %s1442, 2
        %s1444 = scalar_lea.vmem [#allocation2], %s1443
        // Predicated region
        $region53: #{mlp_forward.1} parent=51 // pred_check
          %p1445 = pneg %p213
        $region54: #{mlp_forward.1} parent=51 // pred_check_branch
          %1447 = sbr.rel (%p1445) target = $region56
        $region55: #{mlp_forward.1} parent=51 // pred_region
          %s1449 = ssub.s32 32, 32
          %1450 = vsyncadd %s1441, %s1449
          %s1451 = smul.addr %s22, 32
          %s1452 = scalar_lea.hbm %s8, %s1451
          %s1454 = sshll.u32 %s1444, 4
          %s1455 = int_to_ptr.vmem [resolvable:$true] %s1454
          %1457 = dma.vmem_to_hbm [thread:$0]  %s1455, 32, %s1452, %s1441
        $region56: #{mlp_forward.1} parent=51 // pred_fallthru
          _
      $region52: #{mlp_forward.1} parent=5 // pred_fallthru
        _
      %p1458 = scmp.le.s32.totalorder 2, %s17
      // Predicated region
      $region57: #{mlp_forward.1} parent=5 // pred_check
        %p1459 = pneg %p1458
      $region58: #{mlp_forward.1} parent=5 // pred_check_branch
        %1461 = sbr.rel (%p1459) target = $region60
      $region59: #{mlp_forward.1} parent=5 // pred_region
        %s1462 = ssub.s32 %s17, 2
        // Predicated region
        $region61: #{mlp_forward.1} parent=59 // pred_check
          %p1463 = pneg %p219
        $region62: #{mlp_forward.1} parent=59 // pred_check_branch
          %1465 = sbr.rel (%p1463) target = $region64
        $region63: #{mlp_forward.1} parent=59 // pred_region
          %s1466 = sand.u32 %s204, 1
          %s1467 = scalar_lea.sflag [#allocation3], %s1466
          %s1468 = sand.u32 %s204, 1
          %s1469 = smul.addr %s1468, 2
          %s1470 = scalar_lea.vmem [#allocation2], %s1469
          %1471 = dma.done %s1467, 32
        $region64: #{mlp_forward.1} parent=59 // pred_fallthru
          _
      $region60: #{mlp_forward.1} parent=5 // pred_fallthru
        _
    $region6: #{mlp_forward.1} parent=1 // loop_footer
      %s21 = sadd.s32 1, %s17
    $region7: #{mlp_forward.1} parent=1 // loop_footer_branch
      %16 = sbr.rel target = $region3
    $region8: #{mlp_forward.1} parent=1 // loop_exit
      _
    %1472 = vsyncpa [#allocation3], 1
    %s1473 = scalar_lea.sflag [#allocation3], 1
    %1474 = vsyncpa %s1473, 1

</llo_original>
